<compile_context>
chip_gen: v6e
topology: v6e:2x2x1
jax: 0.10.0
libtpu: 0.0.40
codegen_flags: <defaults>
</compile_context>

<pallas_src>
import functools
import math

import jax
import jax.numpy as jnp
from jax.experimental import pallas as pl
from jax.experimental.pallas import tpu as pltpu


def _attn_kernel(q_ref, k_ref, v_ref, o_ref, *, scale, n_heads, d_k, d_v):
    """One grid step: G independent (b, t) attention problems, all heads.

    q_ref: (G, N, H*d_k)  k_ref: (G, S, H*d_k)  v_ref: (G, S, H*d_v)  (compute dtype)
    o_ref: (G, N, H*d_v)  (output dtype)
    """
    for h in range(n_heads):                                   # H small & static: unrolled
        qh = q_ref[:, :, h * d_k:(h + 1) * d_k]                # (G, N, d_k)
        kh = k_ref[:, :, h * d_k:(h + 1) * d_k]                # (G, S, d_k)
        vh = v_ref[:, :, h * d_v:(h + 1) * d_v]                # (G, S, d_v)

        # scores = q @ k^T contracted over d_k directly (no materialized k.T);
        # bf16 MXU inputs, f32 accumulation.
        s = jnp.einsum("gnd,gsd->gns", qh, kh,
                       preferred_element_type=jnp.float32)     # (G, N, S)
        s = s * scale                                          # scale applied in f32

        # Numerically-stable softmax over the key axis, entirely in f32.
        m = jnp.max(s, axis=-1, keepdims=True)
        p = jnp.exp(s - m)
        l = jnp.sum(p, axis=-1, keepdims=True)
        a = p * pl.reciprocal(l, approx=True)                  # EUP slot (≈ free)

        # TODO(synk): attention_dropout (p=0.1) is identity in eval mode; a
        # training variant would use pltpu.prng_seed + pltpu.stateful_bernoulli.

        # A cast to compute dtype only for the MXU; accumulation stays f32.
        oh = jnp.einsum("gns,gsd->gnd", a.astype(vh.dtype), vh,
                        preferred_element_type=jnp.float32)    # (G, N, d_v)

        # Store each head directly into the output block: only one head's
        # partial result is live at a time (no H-way concat temp).
        o_ref[:, :, h * d_v:(h + 1) * d_v] = oh.astype(o_ref.dtype)


def _largest_divisor_leq(n, cap):
    cap = int(max(1, min(cap, n)))
    for g in range(cap, 0, -1):
        if n % g == 0:
            return g
    return 1


def _num_tensorcores():
    """Best-effort TensorCores-per-device (v7x / megacore -> 2, else 1)."""
    try:
        kind = (jax.devices()[0].device_kind or "").lower()
    except Exception:
        return 1
    return 2 if any(tag in kind for tag in ("v7", "v4", "v5p")) else 1


def full_attention(queries, keys, values, attention_mask=None, scale=None,
                   compute_dtype=jnp.bfloat16,
                   block_vmem_budget_bytes=16 * 1024 * 1024):
    """Pallas implementation of FullAttention.forward (mask_flag=False, eval).

    Inputs move through HBM in `compute_dtype` (default bf16); softmax and all
    accumulations are f32; the output is written in queries.dtype. If upstream
    layers already produce bf16 the cast below is a no-op.
    """
    if attention_mask is not None:
        # mask_flag=False path: the module ignores the mask; refuse silently-wrong use.
        raise NotImplementedError(
            "mask_flag=True / attention_mask path is not implemented")

    B, T, N, H, d_k = queries.shape
    _, _, S, _, d_v = values.shape
    scale = float(scale) if scale is not None else 1.0 / math.sqrt(d_k)
    out_dtype = queries.dtype

    BT = B * T
    # Free reshapes only (no HBM transposes): collapse (B, T) and fold the
    # contiguous (H, d) trailing dims so each grid step DMAs contiguous rows.
    qf = queries.astype(compute_dtype).reshape(BT, N, H * d_k)
    kf = keys.astype(compute_dtype).reshape(BT, S, H * d_k)
    vf = values.astype(compute_dtype).reshape(BT, S, H * d_v)

    # ---- Block-size selection (G = number of (b,t) problems per grid step) --
    # Per BT-row VMEM bytes: double-buffered q/k/v/out blocks + f32 in-kernel
    # intermediates (scores, exp, one head's partial output, operand casts).
    in_item = jnp.dtype(compute_dtype).itemsize
    out_item = jnp.dtype(out_dtype).itemsize
    io_bytes = (2 * in_item * (N * H * d_k + S * H * d_k + S * H * d_v)
                + 2 * out_item * (N * H * d_v))
    interm_bytes = 4 * (2 * N * S + N * d_v + (N + S) * max(d_k, d_v) + N * H * d_v)
    per_row = io_bytes + interm_bytes

    n_tc = _num_tensorcores()
    g_target = max(1, block_vmem_budget_bytes // per_row)
    # Only multi-TC chips need grid extent >= n_tc; on single-TC v5e/v6e use
    # the largest block that fits the budget (fewer grid steps, bigger DMAs).
    g_cap = BT if n_tc <= 1 else max(1, BT // n_tc)
    g_target = max(1, min(g_target, g_cap))

    G = _largest_divisor_leq(BT, g_target)
    BT_run = BT
    if 2 * G < g_target:
        # Awkward BT (e.g. prime): pad up instead of collapsing to tiny blocks.
        # Padded rows see zero scores (finite softmax) and are sliced off below.
        G = g_target
        BT_run = -(-BT // G) * G
        pad = BT_run - BT
        qf = jnp.pad(qf, ((0, pad), (0, 0), (0, 0)))
        kf = jnp.pad(kf, ((0, pad), (0, 0), (0, 0)))
        vf = jnp.pad(vf, ((0, pad), (0, 0), (0, 0)))

    grid = (BT_run // G,)

    # Explicit scoped-VMEM limit from the real footprint (+ headroom), kept
    # under v7x's 64 MiB physical VMEM.
    needed = G * per_row
    vmem_limit = int(min(max(needed + (2 << 20), 16 << 20), 48 << 20))

    out = pl.pallas_call(
        functools.partial(_attn_kernel, scale=scale, n_heads=H, d_k=d_k, d_v=d_v),
        out_shape=jax.ShapeDtypeStruct((BT_run, N, H * d_v), out_dtype),
        grid=grid,
        in_specs=[
            pl.BlockSpec((G, N, H * d_k), lambda i: (i, 0, 0)),
            pl.BlockSpec((G, S, H * d_k), lambda i: (i, 0, 0)),
            pl.BlockSpec((G, S, H * d_v), lambda i: (i, 0, 0)),
        ],
        out_specs=pl.BlockSpec((G, N, H * d_v), lambda i: (i, 0, 0)),
        compiler_params=pltpu.CompilerParams(
            dimension_semantics=("parallel",),
            vmem_limit_bytes=vmem_limit),
    )(qf, kf, vf)

    if BT_run != BT:
        out = out[:BT]
    V = out.reshape(B, T, N, H, d_v)   # free reshape back to (B, T, N, H, d_v)
    return V, None                     # output_attention=False


def _reference(queries, keys, values, scale=None):
    B, T, N, H, d_k = queries.shape
    scale = scale if scale is not None else 1.0 / math.sqrt(d_k)
    scores = jnp.einsum("btnhe,btshe->bthns", queries, keys)
    A = jax.nn.softmax(scale * scores, axis=-1)
    V = jnp.einsum("bthns,btshd->btnhd", A, values)
    return V


if __name__ == "__main__":
    # Module config: d_model = n_heads * d_k = 32, n_heads = 4.
    B, T, N, S, H, d_k, d_v = 2, 2, 8, 8, 4, 8, 8

    key = jax.random.PRNGKey(0)
    kq, kk, kv = jax.random.split(key, 3)
    queries = jax.random.normal(kq, (B, T, N, H, d_k), dtype=jnp.float32)
    keys = jax.random.normal(kk, (B, T, S, H, d_k), dtype=jnp.float32)
    values = jax.random.normal(kv, (B, T, S, H, d_v), dtype=jnp.float32)

    V, A = full_attention(queries, keys, values, attention_mask=None)
    V = jax.block_until_ready(V)

    assert V.shape == (B, T, N, H, d_v)
    assert V.dtype == queries.dtype
    assert A is None

    # Reference evaluated on the same bf16-rounded inputs: isolates the
    # kernel's own error (f32 softmax, approx EUP reciprocal, bf16 A cast)
    # from the deliberate bf16 input quantization.
    qb = queries.astype(jnp.bfloat16).astype(jnp.float32)
    kb = keys.astype(jnp.bfloat16).astype(jnp.float32)
    vb = values.astype(jnp.bfloat16).astype(jnp.float32)
    V_ref = _reference(qb, kb, vb)
    max_err = float(jnp.max(jnp.abs(V - V_ref)))
    assert jnp.allclose(V, V_ref, atol=2e-2, rtol=2e-2), max_err
    print("KERNEL_OK")
</pallas_src>

<mosaic_0001>
module attributes {stable_mosaic.version = 11 : i64} {
  func.func @_attn_kernel(%arg0: i32, %arg1: memref<4x8x32xbf16, #tpu.memory_space<vmem>>, %arg2: memref<4x8x32xbf16, #tpu.memory_space<vmem>>, %arg3: memref<4x8x32xbf16, #tpu.memory_space<vmem>>, %arg4: memref<4x8x32xf32, #tpu.memory_space<vmem>>) attributes {dimension_semantics = [#tpu.dimension_semantics<parallel>], iteration_bounds = array<i64: 1>, scalar_prefetch = 0 : i64, scratch_operands = 0 : i64, tpu.core_type = #tpu.core_type<tc>, window_params = [{transform_indices = @transform_0, window_bounds = array<i64: 4, 8, 32>}, {transform_indices = @transform_1, window_bounds = array<i64: 4, 8, 32>}, {transform_indices = @transform_2, window_bounds = array<i64: 4, 8, 32>}, {transform_indices = @transform_3, window_bounds = array<i64: 4, 8, 32>}]} {
    %c0 = arith.constant 0 : index
    %c0_0 = arith.constant 0 : index
    %c0_1 = arith.constant 0 : index
    %0 = vector.load %arg1[%c0, %c0_0, %c0_1] : memref<4x8x32xbf16, #tpu.memory_space<vmem>>, vector<4x8x8xbf16>
    %c0_2 = arith.constant 0 : index
    %c0_3 = arith.constant 0 : index
    %c0_4 = arith.constant 0 : index
    %1 = vector.load %arg2[%c0_2, %c0_3, %c0_4] : memref<4x8x32xbf16, #tpu.memory_space<vmem>>, vector<4x8x8xbf16>
    %c0_5 = arith.constant 0 : index
    %c0_6 = arith.constant 0 : index
    %c0_7 = arith.constant 0 : index
    %2 = vector.load %arg3[%c0_5, %c0_6, %c0_7] : memref<4x8x32xbf16, #tpu.memory_space<vmem>>, vector<4x8x8xbf16>
    "tpu.trace_start"() <{level = 10 : i32, message = "gnd,gsd->gns"}> : () -> ()
    %cst = arith.constant dense<0.000000e+00> : vector<4x8x8xf32>
    %3 = tpu.matmul %0, %1, %cst {dimension_numbers = #tpu.dot_dimension_numbers<[2], [2], [1], [1], [0, 0, 0, 1, 1, 1], [0], [0]>} : vector<4x8x8xbf16>, vector<4x8x8xbf16>, vector<4x8x8xf32> -> vector<4x8x8xf32>
    "tpu.trace_stop"() : () -> ()
    %cst_8 = arith.constant 0.353553385 : f32
    %4 = vector.broadcast %cst_8 : f32 to vector<4x8x8xf32>
    %5 = arith.mulf %3, %4 : vector<4x8x8xf32>
    %cst_9 = arith.constant dense<0xFF800000> : vector<4x8xf32>
    %6 = vector.multi_reduction <maximumf>, %5, %cst_9 [2] : vector<4x8x8xf32> to vector<4x8xf32>
    %7 = vector.shape_cast %6 : vector<4x8xf32> to vector<4x8x1xf32>
    %8 = vector.broadcast %7 : vector<4x8x1xf32> to vector<4x8x8xf32>
    %9 = arith.subf %5, %8 : vector<4x8x8xf32>
    %10 = math.exp %9 : vector<4x8x8xf32>
    %cst_10 = arith.constant dense<0.000000e+00> : vector<4x8xf32>
    %11 = vector.multi_reduction <add>, %10, %cst_10 [2] : vector<4x8x8xf32> to vector<4x8xf32>
    %12 = vector.shape_cast %11 : vector<4x8xf32> to vector<4x8x1xf32>
    %13 = tpu.reciprocal %12 {approx = true} : vector<4x8x1xf32> -> vector<4x8x1xf32>
    %14 = vector.broadcast %13 : vector<4x8x1xf32> to vector<4x8x8xf32>
    %15 = arith.mulf %10, %14 : vector<4x8x8xf32>
    %16 = arith.truncf %15 : vector<4x8x8xf32> to vector<4x8x8xbf16>
    "tpu.trace_start"() <{level = 10 : i32, message = "gns,gsd->gnd"}> : () -> ()
    %cst_11 = arith.constant dense<0.000000e+00> : vector<4x8x8xf32>
    %17 = tpu.matmul %16, %2, %cst_11 {dimension_numbers = #tpu.dot_dimension_numbers<[2], [1], [1], [2], [0, 0, 0, 1, 1, 2], [0], [0]>} : vector<4x8x8xbf16>, vector<4x8x8xbf16>, vector<4x8x8xf32> -> vector<4x8x8xf32>
    "tpu.trace_stop"() : () -> ()
    %c0_12 = arith.constant 0 : index
    %c0_13 = arith.constant 0 : index
    %c0_14 = arith.constant 0 : index
    %18 = vector.load %arg4[%c0_12, %c0_13, %c0_14] : memref<4x8x32xf32, #tpu.memory_space<vmem>>, vector<4x8x8xf32>
    tpu.vector_store %arg4[%c0_12, %c0_13, %c0_14], %17 {strides = array<i32>} : memref<4x8x32xf32, #tpu.memory_space<vmem>>, vector<4x8x8xf32>,
    %c0_15 = arith.constant 0 : index
    %c0_16 = arith.constant 0 : index
    %c8 = arith.constant 8 : index
    %19 = vector.load %arg1[%c0_15, %c0_16, %c8] : memref<4x8x32xbf16, #tpu.memory_space<vmem>>, vector<4x8x8xbf16>
    %c0_17 = arith.constant 0 : index
    %c0_18 = arith.constant 0 : index
    %c8_19 = arith.constant 8 : index
    %20 = vector.load %arg2[%c0_17, %c0_18, %c8_19] : memref<4x8x32xbf16, #tpu.memory_space<vmem>>, vector<4x8x8xbf16>
    %c0_20 = arith.constant 0 : index
    %c0_21 = arith.constant 0 : index
    %c8_22 = arith.constant 8 : index
    %21 = vector.load %arg3[%c0_20, %c0_21, %c8_22] : memref<4x8x32xbf16, #tpu.memory_space<vmem>>, vector<4x8x8xbf16>
    "tpu.trace_start"() <{level = 10 : i32, message = "gnd,gsd->gns"}> : () -> ()
    %cst_23 = arith.constant dense<0.000000e+00> : vector<4x8x8xf32>
    %22 = tpu.matmul %19, %20, %cst_23 {dimension_numbers = #tpu.dot_dimension_numbers<[2], [2], [1], [1], [0, 0, 0, 1, 1, 1], [0], [0]>} : vector<4x8x8xbf16>, vector<4x8x8xbf16>, vector<4x8x8xf32> -> vector<4x8x8xf32>
    "tpu.trace_stop"() : () -> ()
    %cst_24 = arith.constant 0.353553385 : f32
    %23 = vector.broadcast %cst_24 : f32 to vector<4x8x8xf32>
    %24 = arith.mulf %22, %23 : vector<4x8x8xf32>
    %cst_25 = arith.constant dense<0xFF800000> : vector<4x8xf32>
    %25 = vector.multi_reduction <maximumf>, %24, %cst_25 [2] : vector<4x8x8xf32> to vector<4x8xf32>
    %26 = vector.shape_cast %25 : vector<4x8xf32> to vector<4x8x1xf32>
    %27 = vector.broadcast %26 : vector<4x8x1xf32> to vector<4x8x8xf32>
    %28 = arith.subf %24, %27 : vector<4x8x8xf32>
    %29 = math.exp %28 : vector<4x8x8xf32>
    %cst_26 = arith.constant dense<0.000000e+00> : vector<4x8xf32>
    %30 = vector.multi_reduction <add>, %29, %cst_26 [2] : vector<4x8x8xf32> to vector<4x8xf32>
    %31 = vector.shape_cast %30 : vector<4x8xf32> to vector<4x8x1xf32>
    %32 = tpu.reciprocal %31 {approx = true} : vector<4x8x1xf32> -> vector<4x8x1xf32>
    %33 = vector.broadcast %32 : vector<4x8x1xf32> to vector<4x8x8xf32>
    %34 = arith.mulf %29, %33 : vector<4x8x8xf32>
    %35 = arith.truncf %34 : vector<4x8x8xf32> to vector<4x8x8xbf16>
    "tpu.trace_start"() <{level = 10 : i32, message = "gns,gsd->gnd"}> : () -> ()
    %cst_27 = arith.constant dense<0.000000e+00> : vector<4x8x8xf32>
    %36 = tpu.matmul %35, %21, %cst_27 {dimension_numbers = #tpu.dot_dimension_numbers<[2], [1], [1], [2], [0, 0, 0, 1, 1, 2], [0], [0]>} : vector<4x8x8xbf16>, vector<4x8x8xbf16>, vector<4x8x8xf32> -> vector<4x8x8xf32>
    "tpu.trace_stop"() : () -> ()
    %c0_28 = arith.constant 0 : index
    %c0_29 = arith.constant 0 : index
    %c8_30 = arith.constant 8 : index
    %37 = vector.load %arg4[%c0_28, %c0_29, %c8_30] : memref<4x8x32xf32, #tpu.memory_space<vmem>>, vector<4x8x8xf32>
    tpu.vector_store %arg4[%c0_28, %c0_29, %c8_30], %36 {strides = array<i32>} : memref<4x8x32xf32, #tpu.memory_space<vmem>>, vector<4x8x8xf32>,
    %c0_31 = arith.constant 0 : index
    %c0_32 = arith.constant 0 : index
    %c16 = arith.constant 16 : index
    %38 = vector.load %arg1[%c0_31, %c0_32, %c16] : memref<4x8x32xbf16, #tpu.memory_space<vmem>>, vector<4x8x8xbf16>
    %c0_33 = arith.constant 0 : index
    %c0_34 = arith.constant 0 : index
    %c16_35 = arith.constant 16 : index
    %39 = vector.load %arg2[%c0_33, %c0_34, %c16_35] : memref<4x8x32xbf16, #tpu.memory_space<vmem>>, vector<4x8x8xbf16>
    %c0_36 = arith.constant 0 : index
    %c0_37 = arith.constant 0 : index
    %c16_38 = arith.constant 16 : index
    %40 = vector.load %arg3[%c0_36, %c0_37, %c16_38] : memref<4x8x32xbf16, #tpu.memory_space<vmem>>, vector<4x8x8xbf16>
    "tpu.trace_start"() <{level = 10 : i32, message = "gnd,gsd->gns"}> : () -> ()
    %cst_39 = arith.constant dense<0.000000e+00> : vector<4x8x8xf32>
    %41 = tpu.matmul %38, %39, %cst_39 {dimension_numbers = #tpu.dot_dimension_numbers<[2], [2], [1], [1], [0, 0, 0, 1, 1, 1], [0], [0]>} : vector<4x8x8xbf16>, vector<4x8x8xbf16>, vector<4x8x8xf32> -> vector<4x8x8xf32>
    "tpu.trace_stop"() : () -> ()
    %cst_40 = arith.constant 0.353553385 : f32
    %42 = vector.broadcast %cst_40 : f32 to vector<4x8x8xf32>
    %43 = arith.mulf %41, %42 : vector<4x8x8xf32>
    %cst_41 = arith.constant dense<0xFF800000> : vector<4x8xf32>
    %44 = vector.multi_reduction <maximumf>, %43, %cst_41 [2] : vector<4x8x8xf32> to vector<4x8xf32>
    %45 = vector.shape_cast %44 : vector<4x8xf32> to vector<4x8x1xf32>
    %46 = vector.broadcast %45 : vector<4x8x1xf32> to vector<4x8x8xf32>
    %47 = arith.subf %43, %46 : vector<4x8x8xf32>
    %48 = math.exp %47 : vector<4x8x8xf32>
    %cst_42 = arith.constant dense<0.000000e+00> : vector<4x8xf32>
    %49 = vector.multi_reduction <add>, %48, %cst_42 [2] : vector<4x8x8xf32> to vector<4x8xf32>
    %50 = vector.shape_cast %49 : vector<4x8xf32> to vector<4x8x1xf32>
    %51 = tpu.reciprocal %50 {approx = true} : vector<4x8x1xf32> -> vector<4x8x1xf32>
    %52 = vector.broadcast %51 : vector<4x8x1xf32> to vector<4x8x8xf32>
    %53 = arith.mulf %48, %52 : vector<4x8x8xf32>
    %54 = arith.truncf %53 : vector<4x8x8xf32> to vector<4x8x8xbf16>
    "tpu.trace_start"() <{level = 10 : i32, message = "gns,gsd->gnd"}> : () -> ()
    %cst_43 = arith.constant dense<0.000000e+00> : vector<4x8x8xf32>
    %55 = tpu.matmul %54, %40, %cst_43 {dimension_numbers = #tpu.dot_dimension_numbers<[2], [1], [1], [2], [0, 0, 0, 1, 1, 2], [0], [0]>} : vector<4x8x8xbf16>, vector<4x8x8xbf16>, vector<4x8x8xf32> -> vector<4x8x8xf32>
    "tpu.trace_stop"() : () -> ()
    %c0_44 = arith.constant 0 : index
    %c0_45 = arith.constant 0 : index
    %c16_46 = arith.constant 16 : index
    %56 = vector.load %arg4[%c0_44, %c0_45, %c16_46] : memref<4x8x32xf32, #tpu.memory_space<vmem>>, vector<4x8x8xf32>
    tpu.vector_store %arg4[%c0_44, %c0_45, %c16_46], %55 {strides = array<i32>} : memref<4x8x32xf32, #tpu.memory_space<vmem>>, vector<4x8x8xf32>,
    %c0_47 = arith.constant 0 : index
    %c0_48 = arith.constant 0 : index
    %c24 = arith.constant 24 : index
    %57 = vector.load %arg1[%c0_47, %c0_48, %c24] : memref<4x8x32xbf16, #tpu.memory_space<vmem>>, vector<4x8x8xbf16>
    %c0_49 = arith.constant 0 : index
    %c0_50 = arith.constant 0 : index
    %c24_51 = arith.constant 24 : index
    %58 = vector.load %arg2[%c0_49, %c0_50, %c24_51] : memref<4x8x32xbf16, #tpu.memory_space<vmem>>, vector<4x8x8xbf16>
    %c0_52 = arith.constant 0 : index
    %c0_53 = arith.constant 0 : index
    %c24_54 = arith.constant 24 : index
    %59 = vector.load %arg3[%c0_52, %c0_53, %c24_54] : memref<4x8x32xbf16, #tpu.memory_space<vmem>>, vector<4x8x8xbf16>
    "tpu.trace_start"() <{level = 10 : i32, message = "gnd,gsd->gns"}> : () -> ()
    %cst_55 = arith.constant dense<0.000000e+00> : vector<4x8x8xf32>
    %60 = tpu.matmul %57, %58, %cst_55 {dimension_numbers = #tpu.dot_dimension_numbers<[2], [2], [1], [1], [0, 0, 0, 1, 1, 1], [0], [0]>} : vector<4x8x8xbf16>, vector<4x8x8xbf16>, vector<4x8x8xf32> -> vector<4x8x8xf32>
    "tpu.trace_stop"() : () -> ()
    %cst_56 = arith.constant 0.353553385 : f32
    %61 = vector.broadcast %cst_56 : f32 to vector<4x8x8xf32>
    %62 = arith.mulf %60, %61 : vector<4x8x8xf32>
    %cst_57 = arith.constant dense<0xFF800000> : vector<4x8xf32>
    %63 = vector.multi_reduction <maximumf>, %62, %cst_57 [2] : vector<4x8x8xf32> to vector<4x8xf32>
    %64 = vector.shape_cast %63 : vector<4x8xf32> to vector<4x8x1xf32>
    %65 = vector.broadcast %64 : vector<4x8x1xf32> to vector<4x8x8xf32>
    %66 = arith.subf %62, %65 : vector<4x8x8xf32>
    %67 = math.exp %66 : vector<4x8x8xf32>
    %cst_58 = arith.constant dense<0.000000e+00> : vector<4x8xf32>
    %68 = vector.multi_reduction <add>, %67, %cst_58 [2] : vector<4x8x8xf32> to vector<4x8xf32>
    %69 = vector.shape_cast %68 : vector<4x8xf32> to vector<4x8x1xf32>
    %70 = tpu.reciprocal %69 {approx = true} : vector<4x8x1xf32> -> vector<4x8x1xf32>
    %71 = vector.broadcast %70 : vector<4x8x1xf32> to vector<4x8x8xf32>
    %72 = arith.mulf %67, %71 : vector<4x8x8xf32>
    %73 = arith.truncf %72 : vector<4x8x8xf32> to vector<4x8x8xbf16>
    "tpu.trace_start"() <{level = 10 : i32, message = "gns,gsd->gnd"}> : () -> ()
    %cst_59 = arith.constant dense<0.000000e+00> : vector<4x8x8xf32>
    %74 = tpu.matmul %73, %59, %cst_59 {dimension_numbers = #tpu.dot_dimension_numbers<[2], [1], [1], [2], [0, 0, 0, 1, 1, 2], [0], [0]>} : vector<4x8x8xbf16>, vector<4x8x8xbf16>, vector<4x8x8xf32> -> vector<4x8x8xf32>
    "tpu.trace_stop"() : () -> ()
    %c0_60 = arith.constant 0 : index
    %c0_61 = arith.constant 0 : index
    %c24_62 = arith.constant 24 : index
    %75 = vector.load %arg4[%c0_60, %c0_61, %c24_62] : memref<4x8x32xf32, #tpu.memory_space<vmem>>, vector<4x8x8xf32>
    tpu.vector_store %arg4[%c0_60, %c0_61, %c24_62], %74 {strides = array<i32>} : memref<4x8x32xf32, #tpu.memory_space<vmem>>, vector<4x8x8xf32>,
    return
  }
  func.func @transform_0(%arg0: i32) -> (i32, i32, i32) {
    %c0_i32 = arith.constant 0 : i32
    %c0_i32_0 = arith.constant 0 : i32
    %c0_i32_1 = arith.constant 0 : i32
    return %arg0, %c0_i32, %c0_i32_0 : i32, i32, i32
  }
  func.func @transform_1(%arg0: i32) -> (i32, i32, i32) {
    %c0_i32 = arith.constant 0 : i32
    %c0_i32_0 = arith.constant 0 : i32
    %c0_i32_1 = arith.constant 0 : i32
    return %arg0, %c0_i32, %c0_i32_0 : i32, i32, i32
  }
  func.func @transform_2(%arg0: i32) -> (i32, i32, i32) {
    %c0_i32 = arith.constant 0 : i32
    %c0_i32_0 = arith.constant 0 : i32
    %c0_i32_1 = arith.constant 0 : i32
    return %arg0, %c0_i32, %c0_i32_0 : i32, i32, i32
  }
  func.func @transform_3(%arg0: i32) -> (i32, i32, i32) {
    %c0_i32 = arith.constant 0 : i32
    %c0_i32_0 = arith.constant 0 : i32
    %c0_i32_1 = arith.constant 0 : i32
    return %arg0, %c0_i32, %c0_i32_0 : i32, i32, i32
  }
}

</mosaic_0001>

<llo_original>
// kernel: tpu_custom_call.1
$region0: #{tpu_custom_call.1}
  #allocation0 [shape = 'u32[]', space=smem, size = 0x4, offset = 0x4, fixed_abs, tag = 'smem constant byte address 0x4 - core index']
  #allocation1 [shape = 'u32[144,128]{1,0:T(1,128)}', space=vmem, size = 0x12000, scoped, tag = 'internal scratch']
  %s0 = inlined_call_operand.hbm [shape: bf16[4,8,32], index: 0, kind: input, shape index: {}]
  %s1 = inlined_call_operand.hbm [shape: bf16[4,8,32], index: 1, kind: input, shape index: {}]
  %s2 = inlined_call_operand.hbm [shape: bf16[4,8,32], index: 2, kind: input, shape index: {}]
  %s3 = inlined_call_operand.hbm [shape: f32[4,8,32], index: 3, kind: output, shape index: {}]
  %s4 = sld [smem:[#allocation0]]
  $region34: #{tpu_custom_call.1} parent=0
    _
  %s6 = ssub.s32 1, %s4
  %s7 = scalar_select 0, %s6, %s4
  $region1: #{tpu_custom_call.1} parent=0
    #allocation2 [shape = 'u8[8192]{0}', space=vmem, size = 0x2000, scoped, tag = 'input window, operand 0, single buffered']
    #allocation3 [shape = 's32[1]{0}', space=sflag, size = 0x4, scoped, tag = 'scoped memory for tpu_custom_call.1']
    #allocation4 [shape = 's32[1]{0}', space=sflag, size = 0x4, scoped, tag = 'scoped memory for tpu_custom_call.1']
    #allocation5 [shape = 'u8[8192]{0}', space=vmem, size = 0x2000, scoped, tag = 'input window, operand 1, single buffered']
    #allocation6 [shape = 's32[1]{0}', space=sflag, size = 0x4, scoped, tag = 'scoped memory for tpu_custom_call.1']
    #allocation7 [shape = 'u8[8192]{0}', space=vmem, size = 0x2000, scoped, tag = 'input window, operand 2, single buffered']
    #allocation8 [shape = 'u8[16384]{0}', space=vmem, size = 0x4000, scoped, tag = 'output window, operand 0, single buffered']
    %8 = vsyncpa [#allocation3], 0
    %9 = vsyncpa [#allocation6], 0
    %10 = vsyncpa [#allocation4], 0
    // Predicated region
    $region2: #{tpu_custom_call.1} parent=1 // pred_check
      _
    $region3: #{tpu_custom_call.1} parent=1 // pred_check_branch
      %12 = sbr.rel (0) target = $region5
    $region4: #{tpu_custom_call.1} parent=1 // pred_region
      %s14 = ssub.s32 256, 256
      %15 = vsyncadd [#allocation3], %s14
      %s16 = sshll.u32 [#allocation2], 4
      %s17 = int_to_ptr.vmem [resolvable:$true] %s16
      %22 = dma.hbm_to_vmem [thread:$0]  %s0, 256, %s17, [#allocation3], 64, 64, 4
    $region5: #{tpu_custom_call.1} parent=1 // pred_fallthru
      _
    // Predicated region
    $region6: #{tpu_custom_call.1} parent=1 // pred_check
      _
    $region7: #{tpu_custom_call.1} parent=1 // pred_check_branch
      %24 = sbr.rel (0) target = $region9
    $region8: #{tpu_custom_call.1} parent=1 // pred_region
      %s26 = ssub.s32 256, 256
      %27 = vsyncadd [#allocation6], %s26
      %s28 = sshll.u32 [#allocation5], 4
      %s29 = int_to_ptr.vmem [resolvable:$true] %s28
      %34 = dma.hbm_to_vmem [thread:$0]  %s1, 256, %s29, [#allocation6], 64, 64, 4
    $region9: #{tpu_custom_call.1} parent=1 // pred_fallthru
      _
    // Predicated region
    $region10: #{tpu_custom_call.1} parent=1 // pred_check
      _
    $region11: #{tpu_custom_call.1} parent=1 // pred_check_branch
      %36 = sbr.rel (0) target = $region13
    $region12: #{tpu_custom_call.1} parent=1 // pred_region
      %s38 = ssub.s32 256, 256
      %39 = vsyncadd [#allocation6], %s38
      %s40 = sshll.u32 [#allocation7], 4
      %s41 = int_to_ptr.vmem [resolvable:$true] %s40
      %46 = dma.hbm_to_vmem [thread:$0]  %s2, 256, %s41, [#allocation6], 64, 64, 4
    $region13: #{tpu_custom_call.1} parent=1 // pred_fallthru
      _
    // Predicated region
    $region14: #{tpu_custom_call.1} parent=1 // pred_check
      _
    $region15: #{tpu_custom_call.1} parent=1 // pred_check_branch
      %48 = sbr.rel (0) target = $region17
    $region16: #{tpu_custom_call.1} parent=1 // pred_region
      %49 = dma.done [#allocation3], 256
    $region17: #{tpu_custom_call.1} parent=1 // pred_fallthru
      _
    // Predicated region
    $region18: #{tpu_custom_call.1} parent=1 // pred_check
      _
    $region19: #{tpu_custom_call.1} parent=1 // pred_check_branch
      %51 = sbr.rel (0) target = $region21
    $region20: #{tpu_custom_call.1} parent=1 // pred_region
      %52 = dma.done [#allocation6], 256
    $region21: #{tpu_custom_call.1} parent=1 // pred_fallthru
      _
    // Predicated region
    $region22: #{tpu_custom_call.1} parent=1 // pred_check
      _
    $region23: #{tpu_custom_call.1} parent=1 // pred_check_branch
      %54 = sbr.rel (0) target = $region25
    $region24: #{tpu_custom_call.1} parent=1 // pred_region
      %55 = dma.done [#allocation6], 256
    $region25: #{tpu_custom_call.1} parent=1 // pred_fallthru
      _
    %v57 = vld [vmem:[#allocation2] sm:$0xf]
    %v58 = vld [vmem:[#allocation2 + $0x4] sm:$0xf]
    %v59 = vld [vmem:[#allocation2 + $0x8] sm:$0xf]
    %v60 = vld [vmem:[#allocation2 + $0xc] sm:$0xf]
    %v61 = vld [vmem:[#allocation5] sm:$0xf]
    %v62 = vld [vmem:[#allocation5 + $0x4] sm:$0xf]
    %v63 = vld [vmem:[#allocation5 + $0x8] sm:$0xf]
    %v64 = vld [vmem:[#allocation5 + $0xc] sm:$0xf]
    %v65 = vld [vmem:[#allocation7] sm:$0xf]
    %v66 = vld [vmem:[#allocation7 + $0x4] sm:$0xf]
    %v67 = vld [vmem:[#allocation7 + $0x8] sm:$0xf]
    %v68 = vld [vmem:[#allocation7 + $0xc] sm:$0xf]
    %vm69 = vcmask 64512
    %v71 = vsel %vm69, %v57, 0
    %v74 = vsel %vm69, %v61, 0
    %76 = vmatprep.subr.bf16.mxu0 0
    %77 = vmatpush1.bf16.xpose.msra.mxu0 0
    %78 = vmatprep.subr.bf16.mxu0 0
    %79 = vmatpush1.bf16.xpose.msra.mxu0 0
    %80 = vmatprep.subr.bf16.mxu0 0
    %81 = vmatpush1.bf16.xpose.msra.mxu0 0
    %82 = vmatprep.subr.bf16.mxu0 0
    %83 = vmatpush1.bf16.xpose.msra.mxu0 0
    %84 = vmatprep.subr.bf16.mxu0 0
    %85 = vmatpush1.bf16.xpose.msra.mxu0 0
    %86 = vmatprep.subr.bf16.mxu0 0
    %87 = vmatpush1.bf16.xpose.msra.mxu0 0
    %88 = vmatprep.subr.bf16.mxu0 0
    %89 = vmatpush1.bf16.xpose.msra.mxu0 0
    %90 = vmatprep.subr.bf16.mxu0 0
    %91 = vmatpush1.bf16.xpose.msra.mxu0 %v74
    %92 = vmatprep.subr.bf16.mxu0 0
    %93 = vmatpush2.bf16.xpose.msra.mxu0 0
    %94 = vmatprep.subr.bf16.mxu0 0
    %95 = vmatpush2.bf16.xpose.msra.mxu0 0
    %96 = vmatprep.subr.bf16.mxu0 0
    %97 = vmatpush2.bf16.xpose.msra.mxu0 0
    %98 = vmatprep.subr.bf16.mxu0 0
    %99 = vmatpush2.bf16.xpose.msra.mxu0 0
    %100 = vmatprep.subr.bf16.mxu0 0
    %101 = vmatpush2.bf16.xpose.msra.mxu0 0
    %102 = vmatprep.subr.bf16.mxu0 0
    %103 = vmatpush2.bf16.xpose.msra.mxu0 0
    %104 = vmatprep.subr.bf16.mxu0 0
    %105 = vmatpush2.bf16.xpose.msra.mxu0 0
    %106 = vmatprep.subr.bf16.mxu0 0
    %107 = vmatpush2.bf16.xpose.msra.mxu0 0
    %108 = vmatprep.mubr.bf16.mxu0 0
    %109 = vmatmul.mubr.bf16.gmra.mxu0 %v71
    %v110 = vpop.f32.mrf.mxu0
    %v111 = vadd.f32 0.0, %v110
    %v112 = vpop.f32.mrf.mxu0
    %v113 = vpop.f32.mrf.mxu0
    %v114 = vpop.f32.mrf.mxu0
    %115 = vdwg.mxu0
    %v117 = vsel %vm69, %v58, 0
    %v120 = vsel %vm69, %v62, 0
    %122 = vmatprep.subr.bf16.mxu0 0
    %123 = vmatpush1.bf16.xpose.msra.mxu0 0
    %124 = vmatprep.subr.bf16.mxu0 0
    %125 = vmatpush1.bf16.xpose.msra.mxu0 0
    %126 = vmatprep.subr.bf16.mxu0 0
    %127 = vmatpush1.bf16.xpose.msra.mxu0 0
    %128 = vmatprep.subr.bf16.mxu0 0
    %129 = vmatpush1.bf16.xpose.msra.mxu0 0
    %130 = vmatprep.subr.bf16.mxu0 0
    %131 = vmatpush1.bf16.xpose.msra.mxu0 0
    %132 = vmatprep.subr.bf16.mxu0 0
    %133 = vmatpush1.bf16.xpose.msra.mxu0 0
    %134 = vmatprep.subr.bf16.mxu0 0
    %135 = vmatpush1.bf16.xpose.msra.mxu0 0
    %136 = vmatprep.subr.bf16.mxu0 0
    %137 = vmatpush1.bf16.xpose.msra.mxu0 %v120
    %138 = vmatprep.subr.bf16.mxu0 0
    %139 = vmatpush2.bf16.xpose.msra.mxu0 0
    %140 = vmatprep.subr.bf16.mxu0 0
    %141 = vmatpush2.bf16.xpose.msra.mxu0 0
    %142 = vmatprep.subr.bf16.mxu0 0
    %143 = vmatpush2.bf16.xpose.msra.mxu0 0
    %144 = vmatprep.subr.bf16.mxu0 0
    %145 = vmatpush2.bf16.xpose.msra.mxu0 0
    %146 = vmatprep.subr.bf16.mxu0 0
    %147 = vmatpush2.bf16.xpose.msra.mxu0 0
    %148 = vmatprep.subr.bf16.mxu0 0
    %149 = vmatpush2.bf16.xpose.msra.mxu0 0
    %150 = vmatprep.subr.bf16.mxu0 0
    %151 = vmatpush2.bf16.xpose.msra.mxu0 0
    %152 = vmatprep.subr.bf16.mxu0 0
    %153 = vmatpush2.bf16.xpose.msra.mxu0 0
    %154 = vmatprep.mubr.bf16.mxu0 0
    %155 = vmatmul.mubr.bf16.gmra.mxu0 %v117
    %v156 = vpop.f32.mrf.mxu0
    %v157 = vadd.f32 0.0, %v156
    %v158 = vpop.f32.mrf.mxu0
    %v159 = vpop.f32.mrf.mxu0
    %v160 = vpop.f32.mrf.mxu0
    %161 = vdwg.mxu0
    %v163 = vsel %vm69, %v59, 0
    %v166 = vsel %vm69, %v63, 0
    %168 = vmatprep.subr.bf16.mxu0 0
    %169 = vmatpush1.bf16.xpose.msra.mxu0 0
    %170 = vmatprep.subr.bf16.mxu0 0
    %171 = vmatpush1.bf16.xpose.msra.mxu0 0
    %172 = vmatprep.subr.bf16.mxu0 0
    %173 = vmatpush1.bf16.xpose.msra.mxu0 0
    %174 = vmatprep.subr.bf16.mxu0 0
    %175 = vmatpush1.bf16.xpose.msra.mxu0 0
    %176 = vmatprep.subr.bf16.mxu0 0
    %177 = vmatpush1.bf16.xpose.msra.mxu0 0
    %178 = vmatprep.subr.bf16.mxu0 0
    %179 = vmatpush1.bf16.xpose.msra.mxu0 0
    %180 = vmatprep.subr.bf16.mxu0 0
    %181 = vmatpush1.bf16.xpose.msra.mxu0 0
    %182 = vmatprep.subr.bf16.mxu0 0
    %183 = vmatpush1.bf16.xpose.msra.mxu0 %v166
    %184 = vmatprep.subr.bf16.mxu0 0
    %185 = vmatpush2.bf16.xpose.msra.mxu0 0
    %186 = vmatprep.subr.bf16.mxu0 0
    %187 = vmatpush2.bf16.xpose.msra.mxu0 0
    %188 = vmatprep.subr.bf16.mxu0 0
    %189 = vmatpush2.bf16.xpose.msra.mxu0 0
    %190 = vmatprep.subr.bf16.mxu0 0
    %191 = vmatpush2.bf16.xpose.msra.mxu0 0
    %192 = vmatprep.subr.bf16.mxu0 0
    %193 = vmatpush2.bf16.xpose.msra.mxu0 0
    %194 = vmatprep.subr.bf16.mxu0 0
    %195 = vmatpush2.bf16.xpose.msra.mxu0 0
    %196 = vmatprep.subr.bf16.mxu0 0
    %197 = vmatpush2.bf16.xpose.msra.mxu0 0
    %198 = vmatprep.subr.bf16.mxu0 0
    %199 = vmatpush2.bf16.xpose.msra.mxu0 0
    %200 = vmatprep.mubr.bf16.mxu0 0
    %201 = vmatmul.mubr.bf16.gmra.mxu0 %v163
    %v202 = vpop.f32.mrf.mxu0
    %v203 = vadd.f32 0.0, %v202
    %v204 = vpop.f32.mrf.mxu0
    %v205 = vpop.f32.mrf.mxu0
    %v206 = vpop.f32.mrf.mxu0
    %207 = vdwg.mxu0
    %v209 = vsel %vm69, %v60, 0
    %v212 = vsel %vm69, %v64, 0
    %214 = vmatprep.subr.bf16.mxu0 0
    %215 = vmatpush1.bf16.xpose.msra.mxu0 0
    %216 = vmatprep.subr.bf16.mxu0 0
    %217 = vmatpush1.bf16.xpose.msra.mxu0 0
    %218 = vmatprep.subr.bf16.mxu0 0
    %219 = vmatpush1.bf16.xpose.msra.mxu0 0
    %220 = vmatprep.subr.bf16.mxu0 0
    %221 = vmatpush1.bf16.xpose.msra.mxu0 0
    %222 = vmatprep.subr.bf16.mxu0 0
    %223 = vmatpush1.bf16.xpose.msra.mxu0 0
    %224 = vmatprep.subr.bf16.mxu0 0
    %225 = vmatpush1.bf16.xpose.msra.mxu0 0
    %226 = vmatprep.subr.bf16.mxu0 0
    %227 = vmatpush1.bf16.xpose.msra.mxu0 0
    %228 = vmatprep.subr.bf16.mxu0 0
    %229 = vmatpush1.bf16.xpose.msra.mxu0 %v212
    %230 = vmatprep.subr.bf16.mxu0 0
    %231 = vmatpush2.bf16.xpose.msra.mxu0 0
    %232 = vmatprep.subr.bf16.mxu0 0
    %233 = vmatpush2.bf16.xpose.msra.mxu0 0
    %234 = vmatprep.subr.bf16.mxu0 0
    %235 = vmatpush2.bf16.xpose.msra.mxu0 0
    %236 = vmatprep.subr.bf16.mxu0 0
    %237 = vmatpush2.bf16.xpose.msra.mxu0 0
    %238 = vmatprep.subr.bf16.mxu0 0
    %239 = vmatpush2.bf16.xpose.msra.mxu0 0
    %240 = vmatprep.subr.bf16.mxu0 0
    %241 = vmatpush2.bf16.xpose.msra.mxu0 0
    %242 = vmatprep.subr.bf16.mxu0 0
    %243 = vmatpush2.bf16.xpose.msra.mxu0 0
    %244 = vmatprep.subr.bf16.mxu0 0
    %245 = vmatpush2.bf16.xpose.msra.mxu0 0
    %246 = vmatprep.mubr.bf16.mxu0 0
    %247 = vmatmul.mubr.bf16.gmra.mxu0 %v209
    %v248 = vpop.f32.mrf.mxu0
    %v249 = vadd.f32 0.0, %v248
    %v250 = vpop.f32.mrf.mxu0
    %v251 = vpop.f32.mrf.mxu0
    %v252 = vpop.f32.mrf.mxu0
    %253 = vdwg.mxu0
    %v254 = vmul.f32 %v111, 0.35355338
    %v255 = vmul.f32 %v157, 0.35355338
    %v256 = vmul.f32 %v203, 0.35355338
    %v257 = vmul.f32 %v249, 0.35355338
    %v258 = vsel %vm69, %v254, -inf
    %259 = vmax.xlane.f32.xlu0 %v258
    %v260 = vpop.xlane.xlu0 %259
    %v261 = vsel %vm69, %v255, -inf
    %262 = vmax.xlane.f32.xlu0 %v261
    %v263 = vpop.xlane.xlu0 %262
    %v264 = vsel %vm69, %v256, -inf
    %265 = vmax.xlane.f32.xlu0 %v264
    %v266 = vpop.xlane.xlu0 %265
    %v267 = vsel %vm69, %v257, -inf
    %268 = vmax.xlane.f32.xlu0 %v267
    %v269 = vpop.xlane.xlu0 %268
    %v270 = vsub.f32 %v254, %v260
    %v271 = vsub.f32 %v255, %v263
    %v272 = vsub.f32 %v256, %v266
    %v273 = vsub.f32 %v257, %v269
    %v274 = vmul.f32 %v270, 1.442695
    %v275 = vpow.pop %v274
    %v276 = vmul.f32 %v271, 1.442695
    %v277 = vpow.pop %v276
    %v278 = vmul.f32 %v272, 1.442695
    %v279 = vpow.pop %v278
    %v280 = vmul.f32 %v273, 1.442695
    %v281 = vpow.pop %v280
    %v282 = vsel %vm69, %v275, 0.0
    %283 = vadd.xlane.f32.xlu0 %v282
    %v284 = vpop.xlane.xlu0 %283
    %v285 = vsel %vm69, %v277, 0.0
    %286 = vadd.xlane.f32.xlu0 %v285
    %v287 = vpop.xlane.xlu0 %286
    %v288 = vsel %vm69, %v279, 0.0
    %289 = vadd.xlane.f32.xlu0 %v288
    %v290 = vpop.xlane.xlu0 %289
    %v291 = vsel %vm69, %v281, 0.0
    %292 = vadd.xlane.f32.xlu0 %v291
    %v293 = vpop.xlane.xlu0 %292
    %v294 = vrcp.pop %v284
    %v295 = vrcp.pop %v287
    %v296 = vrcp.pop %v290
    %v297 = vrcp.pop %v293
    %v298 = vmul.f32 %v275, %v294
    %v299 = vmul.f32 %v277, %v295
    %v300 = vmul.f32 %v279, %v296
    %v301 = vmul.f32 %v281, %v297
    %v302 = vpack.c.bf16 %v298, %v298
    %v303 = vpack.c.bf16 %v299, %v299
    %v304 = vpack.c.bf16 %v300, %v300
    %v305 = vpack.c.bf16 %v301, %v301
    %v307 = vsel %vm69, %v302, 0
    %vm309 = vcmask 1043456
    %v311 = vsel %vm309, %v65, 0
    %313 = vmatprep.subr.bf16.mxu0 0
    %314 = vmatpush1.bf16.msra.mxu0 0
    %315 = vmatprep.subr.bf16.mxu0 0
    %316 = vmatpush1.bf16.msra.mxu0 0
    %317 = vmatprep.subr.bf16.mxu0 0
    %318 = vmatpush1.bf16.msra.mxu0 0
    %319 = vmatprep.subr.bf16.mxu0 0
    %320 = vmatpush1.bf16.msra.mxu0 0
    %321 = vmatprep.subr.bf16.mxu0 0
    %322 = vmatpush1.bf16.msra.mxu0 0
    %323 = vmatprep.subr.bf16.mxu0 0
    %324 = vmatpush1.bf16.msra.mxu0 0
    %325 = vmatprep.subr.bf16.mxu0 0
    %326 = vmatpush1.bf16.msra.mxu0 0
    %327 = vmatprep.subr.bf16.mxu0 0
    %328 = vmatpush1.bf16.msra.mxu0 %v311
    %329 = vmatprep.subr.bf16.mxu0 0
    %330 = vmatpush2.bf16.msra.mxu0 0
    %331 = vmatprep.subr.bf16.mxu0 0
    %332 = vmatpush2.bf16.msra.mxu0 0
    %333 = vmatprep.subr.bf16.mxu0 0
    %334 = vmatpush2.bf16.msra.mxu0 0
    %335 = vmatprep.subr.bf16.mxu0 0
    %336 = vmatpush2.bf16.msra.mxu0 0
    %337 = vmatprep.subr.bf16.mxu0 0
    %338 = vmatpush2.bf16.msra.mxu0 0
    %339 = vmatprep.subr.bf16.mxu0 0
    %340 = vmatpush2.bf16.msra.mxu0 0
    %341 = vmatprep.subr.bf16.mxu0 0
    %342 = vmatpush2.bf16.msra.mxu0 0
    %343 = vmatprep.subr.bf16.mxu0 0
    %344 = vmatpush2.bf16.msra.mxu0 0
    %345 = vmatprep.mubr.bf16.mxu0 0
    %346 = vmatmul.mubr.bf16.gmra.mxu0 %v307
    %v347 = vpop.f32.mrf.mxu0
    %v348 = vadd.f32 0.0, %v347
    %v349 = vpop.f32.mrf.mxu0
    %v350 = vpop.f32.mrf.mxu0
    %v351 = vpop.f32.mrf.mxu0
    %352 = vdwg.mxu0
    %v354 = vsel %vm69, %v303, 0
    %v357 = vsel %vm309, %v66, 0
    %359 = vmatprep.subr.bf16.mxu0 0
    %360 = vmatpush1.bf16.msra.mxu0 0
    %361 = vmatprep.subr.bf16.mxu0 0
    %362 = vmatpush1.bf16.msra.mxu0 0
    %363 = vmatprep.subr.bf16.mxu0 0
    %364 = vmatpush1.bf16.msra.mxu0 0
    %365 = vmatprep.subr.bf16.mxu0 0
    %366 = vmatpush1.bf16.msra.mxu0 0
    %367 = vmatprep.subr.bf16.mxu0 0
    %368 = vmatpush1.bf16.msra.mxu0 0
    %369 = vmatprep.subr.bf16.mxu0 0
    %370 = vmatpush1.bf16.msra.mxu0 0
    %371 = vmatprep.subr.bf16.mxu0 0
    %372 = vmatpush1.bf16.msra.mxu0 0
    %373 = vmatprep.subr.bf16.mxu0 0
    %374 = vmatpush1.bf16.msra.mxu0 %v357
    %375 = vmatprep.subr.bf16.mxu0 0
    %376 = vmatpush2.bf16.msra.mxu0 0
    %377 = vmatprep.subr.bf16.mxu0 0
    %378 = vmatpush2.bf16.msra.mxu0 0
    %379 = vmatprep.subr.bf16.mxu0 0
    %380 = vmatpush2.bf16.msra.mxu0 0
    %381 = vmatprep.subr.bf16.mxu0 0
    %382 = vmatpush2.bf16.msra.mxu0 0
    %383 = vmatprep.subr.bf16.mxu0 0
    %384 = vmatpush2.bf16.msra.mxu0 0
    %385 = vmatprep.subr.bf16.mxu0 0
    %386 = vmatpush2.bf16.msra.mxu0 0
    %387 = vmatprep.subr.bf16.mxu0 0
    %388 = vmatpush2.bf16.msra.mxu0 0
    %389 = vmatprep.subr.bf16.mxu0 0
    %390 = vmatpush2.bf16.msra.mxu0 0
    %391 = vmatprep.mubr.bf16.mxu0 0
    %392 = vmatmul.mubr.bf16.gmra.mxu0 %v354
    %v393 = vpop.f32.mrf.mxu0
    %v394 = vadd.f32 0.0, %v393
    %v395 = vpop.f32.mrf.mxu0
    %v396 = vpop.f32.mrf.mxu0
    %v397 = vpop.f32.mrf.mxu0
    %398 = vdwg.mxu0
    %v400 = vsel %vm69, %v304, 0
    %v403 = vsel %vm309, %v67, 0
    %405 = vmatprep.subr.bf16.mxu0 0
    %406 = vmatpush1.bf16.msra.mxu0 0
    %407 = vmatprep.subr.bf16.mxu0 0
    %408 = vmatpush1.bf16.msra.mxu0 0
    %409 = vmatprep.subr.bf16.mxu0 0
    %410 = vmatpush1.bf16.msra.mxu0 0
    %411 = vmatprep.subr.bf16.mxu0 0
    %412 = vmatpush1.bf16.msra.mxu0 0
    %413 = vmatprep.subr.bf16.mxu0 0
    %414 = vmatpush1.bf16.msra.mxu0 0
    %415 = vmatprep.subr.bf16.mxu0 0
    %416 = vmatpush1.bf16.msra.mxu0 0
    %417 = vmatprep.subr.bf16.mxu0 0
    %418 = vmatpush1.bf16.msra.mxu0 0
    %419 = vmatprep.subr.bf16.mxu0 0
    %420 = vmatpush1.bf16.msra.mxu0 %v403
    %421 = vmatprep.subr.bf16.mxu0 0
    %422 = vmatpush2.bf16.msra.mxu0 0
    %423 = vmatprep.subr.bf16.mxu0 0
    %424 = vmatpush2.bf16.msra.mxu0 0
    %425 = vmatprep.subr.bf16.mxu0 0
    %426 = vmatpush2.bf16.msra.mxu0 0
    %427 = vmatprep.subr.bf16.mxu0 0
    %428 = vmatpush2.bf16.msra.mxu0 0
    %429 = vmatprep.subr.bf16.mxu0 0
    %430 = vmatpush2.bf16.msra.mxu0 0
    %431 = vmatprep.subr.bf16.mxu0 0
    %432 = vmatpush2.bf16.msra.mxu0 0
    %433 = vmatprep.subr.bf16.mxu0 0
    %434 = vmatpush2.bf16.msra.mxu0 0
    %435 = vmatprep.subr.bf16.mxu0 0
    %436 = vmatpush2.bf16.msra.mxu0 0
    %437 = vmatprep.mubr.bf16.mxu0 0
    %438 = vmatmul.mubr.bf16.gmra.mxu0 %v400
    %v439 = vpop.f32.mrf.mxu0
    %v440 = vadd.f32 0.0, %v439
    %v441 = vpop.f32.mrf.mxu0
    %v442 = vpop.f32.mrf.mxu0
    %v443 = vpop.f32.mrf.mxu0
    %444 = vdwg.mxu0
    %v446 = vsel %vm69, %v305, 0
    %v449 = vsel %vm309, %v68, 0
    %451 = vmatprep.subr.bf16.mxu0 0
    %452 = vmatpush1.bf16.msra.mxu0 0
    %453 = vmatprep.subr.bf16.mxu0 0
    %454 = vmatpush1.bf16.msra.mxu0 0
    %455 = vmatprep.subr.bf16.mxu0 0
    %456 = vmatpush1.bf16.msra.mxu0 0
    %457 = vmatprep.subr.bf16.mxu0 0
    %458 = vmatpush1.bf16.msra.mxu0 0
    %459 = vmatprep.subr.bf16.mxu0 0
    %460 = vmatpush1.bf16.msra.mxu0 0
    %461 = vmatprep.subr.bf16.mxu0 0
    %462 = vmatpush1.bf16.msra.mxu0 0
    %463 = vmatprep.subr.bf16.mxu0 0
    %464 = vmatpush1.bf16.msra.mxu0 0
    %465 = vmatprep.subr.bf16.mxu0 0
    %466 = vmatpush1.bf16.msra.mxu0 %v449
    %467 = vmatprep.subr.bf16.mxu0 0
    %468 = vmatpush2.bf16.msra.mxu0 0
    %469 = vmatprep.subr.bf16.mxu0 0
    %470 = vmatpush2.bf16.msra.mxu0 0
    %471 = vmatprep.subr.bf16.mxu0 0
    %472 = vmatpush2.bf16.msra.mxu0 0
    %473 = vmatprep.subr.bf16.mxu0 0
    %474 = vmatpush2.bf16.msra.mxu0 0
    %475 = vmatprep.subr.bf16.mxu0 0
    %476 = vmatpush2.bf16.msra.mxu0 0
    %477 = vmatprep.subr.bf16.mxu0 0
    %478 = vmatpush2.bf16.msra.mxu0 0
    %479 = vmatprep.subr.bf16.mxu0 0
    %480 = vmatpush2.bf16.msra.mxu0 0
    %481 = vmatprep.subr.bf16.mxu0 0
    %482 = vmatpush2.bf16.msra.mxu0 0
    %483 = vmatprep.mubr.bf16.mxu0 0
    %484 = vmatmul.mubr.bf16.gmra.mxu0 %v446
    %v485 = vpop.f32.mrf.mxu0
    %v486 = vadd.f32 0.0, %v485
    %v487 = vpop.f32.mrf.mxu0
    %v488 = vpop.f32.mrf.mxu0
    %v489 = vpop.f32.mrf.mxu0
    %490 = vdwg.mxu0
    %491 = vst.msk [vmem:[#allocation8] sm:$0xff] %vm69, %v348
    %492 = vst.msk [vmem:[#allocation8 + $0x8] sm:$0xff] %vm69, %v394
    %493 = vst.msk [vmem:[#allocation8 + $0x10] sm:$0xff] %vm69, %v440
    %494 = vst.msk [vmem:[#allocation8 + $0x18] sm:$0xff] %vm69, %v486
    %v495 = vld [vmem:[#allocation2] sm:$0xf]
    %v496 = vld [vmem:[#allocation2 + $0x4] sm:$0xf]
    %v497 = vld [vmem:[#allocation2 + $0x8] sm:$0xf]
    %v498 = vld [vmem:[#allocation2 + $0xc] sm:$0xf]
    %v499 = vld [vmem:[#allocation5] sm:$0xf]
    %v500 = vld [vmem:[#allocation5 + $0x4] sm:$0xf]
    %v501 = vld [vmem:[#allocation5 + $0x8] sm:$0xf]
    %v502 = vld [vmem:[#allocation5 + $0xc] sm:$0xf]
    %v503 = vld [vmem:[#allocation7] sm:$0xf]
    %v504 = vld [vmem:[#allocation7 + $0x4] sm:$0xf]
    %v505 = vld [vmem:[#allocation7 + $0x8] sm:$0xf]
    %v506 = vld [vmem:[#allocation7 + $0xc] sm:$0xf]
    %v508 = vunpack.c.l.b16 %v495
    %v509 = vpack.c.b16 %v508, %v508
    %510 = vrot.lane.b32.xlu0 %v509, 120
    %v511 = vpop.permute.xlu0 %510
    %v513 = vunpack.c.l.b16 %v499
    %v514 = vpack.c.b16 %v513, %v513
    %515 = vrot.lane.b32.xlu0 %v514, 120
    %v516 = vpop.permute.xlu0 %515
    %v518 = vsel %vm69, %v511, 0
    %v521 = vsel %vm69, %v516, 0
    %523 = vmatprep.subr.bf16.mxu0 0
    %524 = vmatpush1.bf16.xpose.msra.mxu0 0
    %525 = vmatprep.subr.bf16.mxu0 0
    %526 = vmatpush1.bf16.xpose.msra.mxu0 0
    %527 = vmatprep.subr.bf16.mxu0 0
    %528 = vmatpush1.bf16.xpose.msra.mxu0 0
    %529 = vmatprep.subr.bf16.mxu0 0
    %530 = vmatpush1.bf16.xpose.msra.mxu0 0
    %531 = vmatprep.subr.bf16.mxu0 0
    %532 = vmatpush1.bf16.xpose.msra.mxu0 0
    %533 = vmatprep.subr.bf16.mxu0 0
    %534 = vmatpush1.bf16.xpose.msra.mxu0 0
    %535 = vmatprep.subr.bf16.mxu0 0
    %536 = vmatpush1.bf16.xpose.msra.mxu0 0
    %537 = vmatprep.subr.bf16.mxu0 0
    %538 = vmatpush1.bf16.xpose.msra.mxu0 %v521
    %539 = vmatprep.subr.bf16.mxu0 0
    %540 = vmatpush2.bf16.xpose.msra.mxu0 0
    %541 = vmatprep.subr.bf16.mxu0 0
    %542 = vmatpush2.bf16.xpose.msra.mxu0 0
    %543 = vmatprep.subr.bf16.mxu0 0
    %544 = vmatpush2.bf16.xpose.msra.mxu0 0
    %545 = vmatprep.subr.bf16.mxu0 0
    %546 = vmatpush2.bf16.xpose.msra.mxu0 0
    %547 = vmatprep.subr.bf16.mxu0 0
    %548 = vmatpush2.bf16.xpose.msra.mxu0 0
    %549 = vmatprep.subr.bf16.mxu0 0
    %550 = vmatpush2.bf16.xpose.msra.mxu0 0
    %551 = vmatprep.subr.bf16.mxu0 0
    %552 = vmatpush2.bf16.xpose.msra.mxu0 0
    %553 = vmatprep.subr.bf16.mxu0 0
    %554 = vmatpush2.bf16.xpose.msra.mxu0 0
    %555 = vmatprep.mubr.bf16.mxu0 0
    %556 = vmatmul.mubr.bf16.gmra.mxu0 %v518
    %v557 = vpop.f32.mrf.mxu0
    %v558 = vadd.f32 0.0, %v557
    %v559 = vpop.f32.mrf.mxu0
    %v560 = vpop.f32.mrf.mxu0
    %v561 = vpop.f32.mrf.mxu0
    %562 = vdwg.mxu0
    %v564 = vunpack.c.l.b16 %v496
    %v565 = vpack.c.b16 %v564, %v564
    %566 = vrot.lane.b32.xlu0 %v565, 120
    %v567 = vpop.permute.xlu0 %566
    %v569 = vunpack.c.l.b16 %v500
    %v570 = vpack.c.b16 %v569, %v569
    %571 = vrot.lane.b32.xlu0 %v570, 120
    %v572 = vpop.permute.xlu0 %571
    %v574 = vsel %vm69, %v567, 0
    %v577 = vsel %vm69, %v572, 0
    %579 = vmatprep.subr.bf16.mxu0 0
    %580 = vmatpush1.bf16.xpose.msra.mxu0 0
    %581 = vmatprep.subr.bf16.mxu0 0
    %582 = vmatpush1.bf16.xpose.msra.mxu0 0
    %583 = vmatprep.subr.bf16.mxu0 0
    %584 = vmatpush1.bf16.xpose.msra.mxu0 0
    %585 = vmatprep.subr.bf16.mxu0 0
    %586 = vmatpush1.bf16.xpose.msra.mxu0 0
    %587 = vmatprep.subr.bf16.mxu0 0
    %588 = vmatpush1.bf16.xpose.msra.mxu0 0
    %589 = vmatprep.subr.bf16.mxu0 0
    %590 = vmatpush1.bf16.xpose.msra.mxu0 0
    %591 = vmatprep.subr.bf16.mxu0 0
    %592 = vmatpush1.bf16.xpose.msra.mxu0 0
    %593 = vmatprep.subr.bf16.mxu0 0
    %594 = vmatpush1.bf16.xpose.msra.mxu0 %v577
    %595 = vmatprep.subr.bf16.mxu0 0
    %596 = vmatpush2.bf16.xpose.msra.mxu0 0
    %597 = vmatprep.subr.bf16.mxu0 0
    %598 = vmatpush2.bf16.xpose.msra.mxu0 0
    %599 = vmatprep.subr.bf16.mxu0 0
    %600 = vmatpush2.bf16.xpose.msra.mxu0 0
    %601 = vmatprep.subr.bf16.mxu0 0
    %602 = vmatpush2.bf16.xpose.msra.mxu0 0
    %603 = vmatprep.subr.bf16.mxu0 0
    %604 = vmatpush2.bf16.xpose.msra.mxu0 0
    %605 = vmatprep.subr.bf16.mxu0 0
    %606 = vmatpush2.bf16.xpose.msra.mxu0 0
    %607 = vmatprep.subr.bf16.mxu0 0
    %608 = vmatpush2.bf16.xpose.msra.mxu0 0
    %609 = vmatprep.subr.bf16.mxu0 0
    %610 = vmatpush2.bf16.xpose.msra.mxu0 0
    %611 = vmatprep.mubr.bf16.mxu0 0
    %612 = vmatmul.mubr.bf16.gmra.mxu0 %v574
    %v613 = vpop.f32.mrf.mxu0
    %v614 = vadd.f32 0.0, %v613
    %v615 = vpop.f32.mrf.mxu0
    %v616 = vpop.f32.mrf.mxu0
    %v617 = vpop.f32.mrf.mxu0
    %618 = vdwg.mxu0
    %v620 = vunpack.c.l.b16 %v497
    %v621 = vpack.c.b16 %v620, %v620
    %622 = vrot.lane.b32.xlu0 %v621, 120
    %v623 = vpop.permute.xlu0 %622
    %v625 = vunpack.c.l.b16 %v501
    %v626 = vpack.c.b16 %v625, %v625
    %627 = vrot.lane.b32.xlu0 %v626, 120
    %v628 = vpop.permute.xlu0 %627
    %v630 = vsel %vm69, %v623, 0
    %v633 = vsel %vm69, %v628, 0
    %635 = vmatprep.subr.bf16.mxu0 0
    %636 = vmatpush1.bf16.xpose.msra.mxu0 0
    %637 = vmatprep.subr.bf16.mxu0 0
    %638 = vmatpush1.bf16.xpose.msra.mxu0 0
    %639 = vmatprep.subr.bf16.mxu0 0
    %640 = vmatpush1.bf16.xpose.msra.mxu0 0
    %641 = vmatprep.subr.bf16.mxu0 0
    %642 = vmatpush1.bf16.xpose.msra.mxu0 0
    %643 = vmatprep.subr.bf16.mxu0 0
    %644 = vmatpush1.bf16.xpose.msra.mxu0 0
    %645 = vmatprep.subr.bf16.mxu0 0
    %646 = vmatpush1.bf16.xpose.msra.mxu0 0
    %647 = vmatprep.subr.bf16.mxu0 0
    %648 = vmatpush1.bf16.xpose.msra.mxu0 0
    %649 = vmatprep.subr.bf16.mxu0 0
    %650 = vmatpush1.bf16.xpose.msra.mxu0 %v633
    %651 = vmatprep.subr.bf16.mxu0 0
    %652 = vmatpush2.bf16.xpose.msra.mxu0 0
    %653 = vmatprep.subr.bf16.mxu0 0
    %654 = vmatpush2.bf16.xpose.msra.mxu0 0
    %655 = vmatprep.subr.bf16.mxu0 0
    %656 = vmatpush2.bf16.xpose.msra.mxu0 0
    %657 = vmatprep.subr.bf16.mxu0 0
    %658 = vmatpush2.bf16.xpose.msra.mxu0 0
    %659 = vmatprep.subr.bf16.mxu0 0
    %660 = vmatpush2.bf16.xpose.msra.mxu0 0
    %661 = vmatprep.subr.bf16.mxu0 0
    %662 = vmatpush2.bf16.xpose.msra.mxu0 0
    %663 = vmatprep.subr.bf16.mxu0 0
    %664 = vmatpush2.bf16.xpose.msra.mxu0 0
    %665 = vmatprep.subr.bf16.mxu0 0
    %666 = vmatpush2.bf16.xpose.msra.mxu0 0
    %667 = vmatprep.mubr.bf16.mxu0 0
    %668 = vmatmul.mubr.bf16.gmra.mxu0 %v630
    %v669 = vpop.f32.mrf.mxu0
    %v670 = vadd.f32 0.0, %v669
    %v671 = vpop.f32.mrf.mxu0
    %v672 = vpop.f32.mrf.mxu0
    %v673 = vpop.f32.mrf.mxu0
    %674 = vdwg.mxu0
    %v676 = vunpack.c.l.b16 %v498
    %v677 = vpack.c.b16 %v676, %v676
    %678 = vrot.lane.b32.xlu0 %v677, 120
    %v679 = vpop.permute.xlu0 %678
    %v681 = vunpack.c.l.b16 %v502
    %v682 = vpack.c.b16 %v681, %v681
    %683 = vrot.lane.b32.xlu0 %v682, 120
    %v684 = vpop.permute.xlu0 %683
    %v686 = vsel %vm69, %v679, 0
    %v689 = vsel %vm69, %v684, 0
    %691 = vmatprep.subr.bf16.mxu0 0
    %692 = vmatpush1.bf16.xpose.msra.mxu0 0
    %693 = vmatprep.subr.bf16.mxu0 0
    %694 = vmatpush1.bf16.xpose.msra.mxu0 0
    %695 = vmatprep.subr.bf16.mxu0 0
    %696 = vmatpush1.bf16.xpose.msra.mxu0 0
    %697 = vmatprep.subr.bf16.mxu0 0
    %698 = vmatpush1.bf16.xpose.msra.mxu0 0
    %699 = vmatprep.subr.bf16.mxu0 0
    %700 = vmatpush1.bf16.xpose.msra.mxu0 0
    %701 = vmatprep.subr.bf16.mxu0 0
    %702 = vmatpush1.bf16.xpose.msra.mxu0 0
    %703 = vmatprep.subr.bf16.mxu0 0
    %704 = vmatpush1.bf16.xpose.msra.mxu0 0
    %705 = vmatprep.subr.bf16.mxu0 0
    %706 = vmatpush1.bf16.xpose.msra.mxu0 %v689
    %707 = vmatprep.subr.bf16.mxu0 0
    %708 = vmatpush2.bf16.xpose.msra.mxu0 0
    %709 = vmatprep.subr.bf16.mxu0 0
    %710 = vmatpush2.bf16.xpose.msra.mxu0 0
    %711 = vmatprep.subr.bf16.mxu0 0
    %712 = vmatpush2.bf16.xpose.msra.mxu0 0
    %713 = vmatprep.subr.bf16.mxu0 0
    %714 = vmatpush2.bf16.xpose.msra.mxu0 0
    %715 = vmatprep.subr.bf16.mxu0 0
    %716 = vmatpush2.bf16.xpose.msra.mxu0 0
    %717 = vmatprep.subr.bf16.mxu0 0
    %718 = vmatpush2.bf16.xpose.msra.mxu0 0
    %719 = vmatprep.subr.bf16.mxu0 0
    %720 = vmatpush2.bf16.xpose.msra.mxu0 0
    %721 = vmatprep.subr.bf16.mxu0 0
    %722 = vmatpush2.bf16.xpose.msra.mxu0 0
    %723 = vmatprep.mubr.bf16.mxu0 0
    %724 = vmatmul.mubr.bf16.gmra.mxu0 %v686
    %v725 = vpop.f32.mrf.mxu0
    %v726 = vadd.f32 0.0, %v725
    %v727 = vpop.f32.mrf.mxu0
    %v728 = vpop.f32.mrf.mxu0
    %v729 = vpop.f32.mrf.mxu0
    %730 = vdwg.mxu0
    %v731 = vmul.f32 %v558, 0.35355338
    %v732 = vmul.f32 %v614, 0.35355338
    %v733 = vmul.f32 %v670, 0.35355338
    %v734 = vmul.f32 %v726, 0.35355338
    %v735 = vsel %vm69, %v731, -inf
    %736 = vmax.xlane.f32.xlu0 %v735
    %v737 = vpop.xlane.xlu0 %736
    %v738 = vsel %vm69, %v732, -inf
    %739 = vmax.xlane.f32.xlu0 %v738
    %v740 = vpop.xlane.xlu0 %739
    %v741 = vsel %vm69, %v733, -inf
    %742 = vmax.xlane.f32.xlu0 %v741
    %v743 = vpop.xlane.xlu0 %742
    %v744 = vsel %vm69, %v734, -inf
    %745 = vmax.xlane.f32.xlu0 %v744
    %v746 = vpop.xlane.xlu0 %745
    %v747 = vsub.f32 %v731, %v737
    %v748 = vsub.f32 %v732, %v740
    %v749 = vsub.f32 %v733, %v743
    %v750 = vsub.f32 %v734, %v746
    %v751 = vmul.f32 %v747, 1.442695
    %v752 = vpow.pop %v751
    %v753 = vmul.f32 %v748, 1.442695
    %v754 = vpow.pop %v753
    %v755 = vmul.f32 %v749, 1.442695
    %v756 = vpow.pop %v755
    %v757 = vmul.f32 %v750, 1.442695
    %v758 = vpow.pop %v757
    %v759 = vsel %vm69, %v752, 0.0
    %760 = vadd.xlane.f32.xlu0 %v759
    %v761 = vpop.xlane.xlu0 %760
    %v762 = vsel %vm69, %v754, 0.0
    %763 = vadd.xlane.f32.xlu0 %v762
    %v764 = vpop.xlane.xlu0 %763
    %v765 = vsel %vm69, %v756, 0.0
    %766 = vadd.xlane.f32.xlu0 %v765
    %v767 = vpop.xlane.xlu0 %766
    %v768 = vsel %vm69, %v758, 0.0
    %769 = vadd.xlane.f32.xlu0 %v768
    %v770 = vpop.xlane.xlu0 %769
    %v771 = vrcp.pop %v761
    %v772 = vrcp.pop %v764
    %v773 = vrcp.pop %v767
    %v774 = vrcp.pop %v770
    %v775 = vmul.f32 %v752, %v771
    %v776 = vmul.f32 %v754, %v772
    %v777 = vmul.f32 %v756, %v773
    %v778 = vmul.f32 %v758, %v774
    %v779 = vpack.c.bf16 %v775, %v775
    %v780 = vpack.c.bf16 %v776, %v776
    %v781 = vpack.c.bf16 %v777, %v777
    %v782 = vpack.c.bf16 %v778, %v778
    %v784 = vunpack.c.l.b16 %v503
    %v785 = vpack.c.b16 %v784, %v784
    %786 = vrot.lane.b32.xlu0 %v785, 120
    %v787 = vpop.permute.xlu0 %786
    %v789 = vsel %vm69, %v779, 0
    %v792 = vsel %vm309, %v787, 0
    %794 = vmatprep.subr.bf16.mxu0 0
    %795 = vmatpush1.bf16.msra.mxu0 0
    %796 = vmatprep.subr.bf16.mxu0 0
    %797 = vmatpush1.bf16.msra.mxu0 0
    %798 = vmatprep.subr.bf16.mxu0 0
    %799 = vmatpush1.bf16.msra.mxu0 0
    %800 = vmatprep.subr.bf16.mxu0 0
    %801 = vmatpush1.bf16.msra.mxu0 0
    %802 = vmatprep.subr.bf16.mxu0 0
    %803 = vmatpush1.bf16.msra.mxu0 0
    %804 = vmatprep.subr.bf16.mxu0 0
    %805 = vmatpush1.bf16.msra.mxu0 0
    %806 = vmatprep.subr.bf16.mxu0 0
    %807 = vmatpush1.bf16.msra.mxu0 0
    %808 = vmatprep.subr.bf16.mxu0 0
    %809 = vmatpush1.bf16.msra.mxu0 %v792
    %810 = vmatprep.subr.bf16.mxu0 0
    %811 = vmatpush2.bf16.msra.mxu0 0
    %812 = vmatprep.subr.bf16.mxu0 0
    %813 = vmatpush2.bf16.msra.mxu0 0
    %814 = vmatprep.subr.bf16.mxu0 0
    %815 = vmatpush2.bf16.msra.mxu0 0
    %816 = vmatprep.subr.bf16.mxu0 0
    %817 = vmatpush2.bf16.msra.mxu0 0
    %818 = vmatprep.subr.bf16.mxu0 0
    %819 = vmatpush2.bf16.msra.mxu0 0
    %820 = vmatprep.subr.bf16.mxu0 0
    %821 = vmatpush2.bf16.msra.mxu0 0
    %822 = vmatprep.subr.bf16.mxu0 0
    %823 = vmatpush2.bf16.msra.mxu0 0
    %824 = vmatprep.subr.bf16.mxu0 0
    %825 = vmatpush2.bf16.msra.mxu0 0
    %826 = vmatprep.mubr.bf16.mxu0 0
    %827 = vmatmul.mubr.bf16.gmra.mxu0 %v789
    %v828 = vpop.f32.mrf.mxu0
    %v829 = vadd.f32 0.0, %v828
    %v830 = vpop.f32.mrf.mxu0
    %v831 = vpop.f32.mrf.mxu0
    %v832 = vpop.f32.mrf.mxu0
    %833 = vdwg.mxu0
    %v835 = vunpack.c.l.b16 %v504
    %v836 = vpack.c.b16 %v835, %v835
    %837 = vrot.lane.b32.xlu0 %v836, 120
    %v838 = vpop.permute.xlu0 %837
    %v840 = vsel %vm69, %v780, 0
    %v843 = vsel %vm309, %v838, 0
    %845 = vmatprep.subr.bf16.mxu0 0
    %846 = vmatpush1.bf16.msra.mxu0 0
    %847 = vmatprep.subr.bf16.mxu0 0
    %848 = vmatpush1.bf16.msra.mxu0 0
    %849 = vmatprep.subr.bf16.mxu0 0
    %850 = vmatpush1.bf16.msra.mxu0 0
    %851 = vmatprep.subr.bf16.mxu0 0
    %852 = vmatpush1.bf16.msra.mxu0 0
    %853 = vmatprep.subr.bf16.mxu0 0
    %854 = vmatpush1.bf16.msra.mxu0 0
    %855 = vmatprep.subr.bf16.mxu0 0
    %856 = vmatpush1.bf16.msra.mxu0 0
    %857 = vmatprep.subr.bf16.mxu0 0
    %858 = vmatpush1.bf16.msra.mxu0 0
    %859 = vmatprep.subr.bf16.mxu0 0
    %860 = vmatpush1.bf16.msra.mxu0 %v843
    %861 = vmatprep.subr.bf16.mxu0 0
    %862 = vmatpush2.bf16.msra.mxu0 0
    %863 = vmatprep.subr.bf16.mxu0 0
    %864 = vmatpush2.bf16.msra.mxu0 0
    %865 = vmatprep.subr.bf16.mxu0 0
    %866 = vmatpush2.bf16.msra.mxu0 0
    %867 = vmatprep.subr.bf16.mxu0 0
    %868 = vmatpush2.bf16.msra.mxu0 0
    %869 = vmatprep.subr.bf16.mxu0 0
    %870 = vmatpush2.bf16.msra.mxu0 0
    %871 = vmatprep.subr.bf16.mxu0 0
    %872 = vmatpush2.bf16.msra.mxu0 0
    %873 = vmatprep.subr.bf16.mxu0 0
    %874 = vmatpush2.bf16.msra.mxu0 0
    %875 = vmatprep.subr.bf16.mxu0 0
    %876 = vmatpush2.bf16.msra.mxu0 0
    %877 = vmatprep.mubr.bf16.mxu0 0
    %878 = vmatmul.mubr.bf16.gmra.mxu0 %v840
    %v879 = vpop.f32.mrf.mxu0
    %v880 = vadd.f32 0.0, %v879
    %v881 = vpop.f32.mrf.mxu0
    %v882 = vpop.f32.mrf.mxu0
    %v883 = vpop.f32.mrf.mxu0
    %884 = vdwg.mxu0
    %v886 = vunpack.c.l.b16 %v505
    %v887 = vpack.c.b16 %v886, %v886
    %888 = vrot.lane.b32.xlu0 %v887, 120
    %v889 = vpop.permute.xlu0 %888
    %v891 = vsel %vm69, %v781, 0
    %v894 = vsel %vm309, %v889, 0
    %896 = vmatprep.subr.bf16.mxu0 0
    %897 = vmatpush1.bf16.msra.mxu0 0
    %898 = vmatprep.subr.bf16.mxu0 0
    %899 = vmatpush1.bf16.msra.mxu0 0
    %900 = vmatprep.subr.bf16.mxu0 0
    %901 = vmatpush1.bf16.msra.mxu0 0
    %902 = vmatprep.subr.bf16.mxu0 0
    %903 = vmatpush1.bf16.msra.mxu0 0
    %904 = vmatprep.subr.bf16.mxu0 0
    %905 = vmatpush1.bf16.msra.mxu0 0
    %906 = vmatprep.subr.bf16.mxu0 0
    %907 = vmatpush1.bf16.msra.mxu0 0
    %908 = vmatprep.subr.bf16.mxu0 0
    %909 = vmatpush1.bf16.msra.mxu0 0
    %910 = vmatprep.subr.bf16.mxu0 0
    %911 = vmatpush1.bf16.msra.mxu0 %v894
    %912 = vmatprep.subr.bf16.mxu0 0
    %913 = vmatpush2.bf16.msra.mxu0 0
    %914 = vmatprep.subr.bf16.mxu0 0
    %915 = vmatpush2.bf16.msra.mxu0 0
    %916 = vmatprep.subr.bf16.mxu0 0
    %917 = vmatpush2.bf16.msra.mxu0 0
    %918 = vmatprep.subr.bf16.mxu0 0
    %919 = vmatpush2.bf16.msra.mxu0 0
    %920 = vmatprep.subr.bf16.mxu0 0
    %921 = vmatpush2.bf16.msra.mxu0 0
    %922 = vmatprep.subr.bf16.mxu0 0
    %923 = vmatpush2.bf16.msra.mxu0 0
    %924 = vmatprep.subr.bf16.mxu0 0
    %925 = vmatpush2.bf16.msra.mxu0 0
    %926 = vmatprep.subr.bf16.mxu0 0
    %927 = vmatpush2.bf16.msra.mxu0 0
    %928 = vmatprep.mubr.bf16.mxu0 0
    %929 = vmatmul.mubr.bf16.gmra.mxu0 %v891
    %v930 = vpop.f32.mrf.mxu0
    %v931 = vadd.f32 0.0, %v930
    %v932 = vpop.f32.mrf.mxu0
    %v933 = vpop.f32.mrf.mxu0
    %v934 = vpop.f32.mrf.mxu0
    %935 = vdwg.mxu0
    %v937 = vunpack.c.l.b16 %v506
    %v938 = vpack.c.b16 %v937, %v937
    %939 = vrot.lane.b32.xlu0 %v938, 120
    %v940 = vpop.permute.xlu0 %939
    %v942 = vsel %vm69, %v782, 0
    %v945 = vsel %vm309, %v940, 0
    %947 = vmatprep.subr.bf16.mxu0 0
    %948 = vmatpush1.bf16.msra.mxu0 0
    %949 = vmatprep.subr.bf16.mxu0 0
    %950 = vmatpush1.bf16.msra.mxu0 0
    %951 = vmatprep.subr.bf16.mxu0 0
    %952 = vmatpush1.bf16.msra.mxu0 0
    %953 = vmatprep.subr.bf16.mxu0 0
    %954 = vmatpush1.bf16.msra.mxu0 0
    %955 = vmatprep.subr.bf16.mxu0 0
    %956 = vmatpush1.bf16.msra.mxu0 0
    %957 = vmatprep.subr.bf16.mxu0 0
    %958 = vmatpush1.bf16.msra.mxu0 0
    %959 = vmatprep.subr.bf16.mxu0 0
    %960 = vmatpush1.bf16.msra.mxu0 0
    %961 = vmatprep.subr.bf16.mxu0 0
    %962 = vmatpush1.bf16.msra.mxu0 %v945
    %963 = vmatprep.subr.bf16.mxu0 0
    %964 = vmatpush2.bf16.msra.mxu0 0
    %965 = vmatprep.subr.bf16.mxu0 0
    %966 = vmatpush2.bf16.msra.mxu0 0
    %967 = vmatprep.subr.bf16.mxu0 0
    %968 = vmatpush2.bf16.msra.mxu0 0
    %969 = vmatprep.subr.bf16.mxu0 0
    %970 = vmatpush2.bf16.msra.mxu0 0
    %971 = vmatprep.subr.bf16.mxu0 0
    %972 = vmatpush2.bf16.msra.mxu0 0
    %973 = vmatprep.subr.bf16.mxu0 0
    %974 = vmatpush2.bf16.msra.mxu0 0
    %975 = vmatprep.subr.bf16.mxu0 0
    %976 = vmatpush2.bf16.msra.mxu0 0
    %977 = vmatprep.subr.bf16.mxu0 0
    %978 = vmatpush2.bf16.msra.mxu0 0
    %979 = vmatprep.mubr.bf16.mxu0 0
    %980 = vmatmul.mubr.bf16.gmra.mxu0 %v942
    %v981 = vpop.f32.mrf.mxu0
    %v982 = vadd.f32 0.0, %v981
    %v983 = vpop.f32.mrf.mxu0
    %v984 = vpop.f32.mrf.mxu0
    %v985 = vpop.f32.mrf.mxu0
    %986 = vdwg.mxu0
    %991 = vrot.lane.b32.xlu0 %v829, 8
    %v992 = vpop.permute.xlu0 %991
    %993 = vrot.lane.b32.xlu0 %v880, 8
    %v994 = vpop.permute.xlu0 %993
    %995 = vrot.lane.b32.xlu0 %v931, 8
    %v996 = vpop.permute.xlu0 %995
    %997 = vrot.lane.b32.xlu0 %v982, 8
    %v998 = vpop.permute.xlu0 %997
    %vm1003 = vcmask 130112
    %1004 = vst.msk [vmem:[#allocation8] sm:$0xff] %vm1003, %v992
    %1005 = vst.msk [vmem:[#allocation8 + $0x8] sm:$0xff] %vm1003, %v994
    %1006 = vst.msk [vmem:[#allocation8 + $0x10] sm:$0xff] %vm1003, %v996
    %1007 = vst.msk [vmem:[#allocation8 + $0x18] sm:$0xff] %vm1003, %v998
    %v1008 = vld [vmem:[#allocation2] sm:$0xf]
    %v1009 = vld [vmem:[#allocation2 + $0x4] sm:$0xf]
    %v1010 = vld [vmem:[#allocation2 + $0x8] sm:$0xf]
    %v1011 = vld [vmem:[#allocation2 + $0xc] sm:$0xf]
    %v1012 = vld [vmem:[#allocation5] sm:$0xf]
    %v1013 = vld [vmem:[#allocation5 + $0x4] sm:$0xf]
    %v1014 = vld [vmem:[#allocation5 + $0x8] sm:$0xf]
    %v1015 = vld [vmem:[#allocation5 + $0xc] sm:$0xf]
    %v1016 = vld [vmem:[#allocation7] sm:$0xf]
    %v1017 = vld [vmem:[#allocation7 + $0x4] sm:$0xf]
    %v1018 = vld [vmem:[#allocation7 + $0x8] sm:$0xf]
    %v1019 = vld [vmem:[#allocation7 + $0xc] sm:$0xf]
    %v1021 = vunpack.c.l.b16 %v1008
    %v1022 = vpack.c.b16 %v1021, %v1021
    %1023 = vrot.lane.b32.xlu0 %v1022, 112
    %v1024 = vpop.permute.xlu0 %1023
    %v1026 = vunpack.c.l.b16 %v1012
    %v1027 = vpack.c.b16 %v1026, %v1026
    %1028 = vrot.lane.b32.xlu0 %v1027, 112
    %v1029 = vpop.permute.xlu0 %1028
    %v1031 = vsel %vm69, %v1024, 0
    %v1034 = vsel %vm69, %v1029, 0
    %1036 = vmatprep.subr.bf16.mxu0 0
    %1037 = vmatpush1.bf16.xpose.msra.mxu0 0
    %1038 = vmatprep.subr.bf16.mxu0 0
    %1039 = vmatpush1.bf16.xpose.msra.mxu0 0
    %1040 = vmatprep.subr.bf16.mxu0 0
    %1041 = vmatpush1.bf16.xpose.msra.mxu0 0
    %1042 = vmatprep.subr.bf16.mxu0 0
    %1043 = vmatpush1.bf16.xpose.msra.mxu0 0
    %1044 = vmatprep.subr.bf16.mxu0 0
    %1045 = vmatpush1.bf16.xpose.msra.mxu0 0
    %1046 = vmatprep.subr.bf16.mxu0 0
    %1047 = vmatpush1.bf16.xpose.msra.mxu0 0
    %1048 = vmatprep.subr.bf16.mxu0 0
    %1049 = vmatpush1.bf16.xpose.msra.mxu0 0
    %1050 = vmatprep.subr.bf16.mxu0 0
    %1051 = vmatpush1.bf16.xpose.msra.mxu0 %v1034
    %1052 = vmatprep.subr.bf16.mxu0 0
    %1053 = vmatpush2.bf16.xpose.msra.mxu0 0
    %1054 = vmatprep.subr.bf16.mxu0 0
    %1055 = vmatpush2.bf16.xpose.msra.mxu0 0
    %1056 = vmatprep.subr.bf16.mxu0 0
    %1057 = vmatpush2.bf16.xpose.msra.mxu0 0
    %1058 = vmatprep.subr.bf16.mxu0 0
    %1059 = vmatpush2.bf16.xpose.msra.mxu0 0
    %1060 = vmatprep.subr.bf16.mxu0 0
    %1061 = vmatpush2.bf16.xpose.msra.mxu0 0
    %1062 = vmatprep.subr.bf16.mxu0 0
    %1063 = vmatpush2.bf16.xpose.msra.mxu0 0
    %1064 = vmatprep.subr.bf16.mxu0 0
    %1065 = vmatpush2.bf16.xpose.msra.mxu0 0
    %1066 = vmatprep.subr.bf16.mxu0 0
    %1067 = vmatpush2.bf16.xpose.msra.mxu0 0
    %1068 = vmatprep.mubr.bf16.mxu0 0
    %1069 = vmatmul.mubr.bf16.gmra.mxu0 %v1031
    %v1070 = vpop.f32.mrf.mxu0
    %v1071 = vadd.f32 0.0, %v1070
    %v1072 = vpop.f32.mrf.mxu0
    %v1073 = vpop.f32.mrf.mxu0
    %v1074 = vpop.f32.mrf.mxu0
    %1075 = vdwg.mxu0
    %v1077 = vunpack.c.l.b16 %v1009
    %v1078 = vpack.c.b16 %v1077, %v1077
    %1079 = vrot.lane.b32.xlu0 %v1078, 112
    %v1080 = vpop.permute.xlu0 %1079
    %v1082 = vunpack.c.l.b16 %v1013
    %v1083 = vpack.c.b16 %v1082, %v1082
    %1084 = vrot.lane.b32.xlu0 %v1083, 112
    %v1085 = vpop.permute.xlu0 %1084
    %v1087 = vsel %vm69, %v1080, 0
    %v1090 = vsel %vm69, %v1085, 0
    %1092 = vmatprep.subr.bf16.mxu0 0
    %1093 = vmatpush1.bf16.xpose.msra.mxu0 0
    %1094 = vmatprep.subr.bf16.mxu0 0
    %1095 = vmatpush1.bf16.xpose.msra.mxu0 0
    %1096 = vmatprep.subr.bf16.mxu0 0
    %1097 = vmatpush1.bf16.xpose.msra.mxu0 0
    %1098 = vmatprep.subr.bf16.mxu0 0
    %1099 = vmatpush1.bf16.xpose.msra.mxu0 0
    %1100 = vmatprep.subr.bf16.mxu0 0
    %1101 = vmatpush1.bf16.xpose.msra.mxu0 0
    %1102 = vmatprep.subr.bf16.mxu0 0
    %1103 = vmatpush1.bf16.xpose.msra.mxu0 0
    %1104 = vmatprep.subr.bf16.mxu0 0
    %1105 = vmatpush1.bf16.xpose.msra.mxu0 0
    %1106 = vmatprep.subr.bf16.mxu0 0
    %1107 = vmatpush1.bf16.xpose.msra.mxu0 %v1090
    %1108 = vmatprep.subr.bf16.mxu0 0
    %1109 = vmatpush2.bf16.xpose.msra.mxu0 0
    %1110 = vmatprep.subr.bf16.mxu0 0
    %1111 = vmatpush2.bf16.xpose.msra.mxu0 0
    %1112 = vmatprep.subr.bf16.mxu0 0
    %1113 = vmatpush2.bf16.xpose.msra.mxu0 0
    %1114 = vmatprep.subr.bf16.mxu0 0
    %1115 = vmatpush2.bf16.xpose.msra.mxu0 0
    %1116 = vmatprep.subr.bf16.mxu0 0
    %1117 = vmatpush2.bf16.xpose.msra.mxu0 0
    %1118 = vmatprep.subr.bf16.mxu0 0
    %1119 = vmatpush2.bf16.xpose.msra.mxu0 0
    %1120 = vmatprep.subr.bf16.mxu0 0
    %1121 = vmatpush2.bf16.xpose.msra.mxu0 0
    %1122 = vmatprep.subr.bf16.mxu0 0
    %1123 = vmatpush2.bf16.xpose.msra.mxu0 0
    %1124 = vmatprep.mubr.bf16.mxu0 0
    %1125 = vmatmul.mubr.bf16.gmra.mxu0 %v1087
    %v1126 = vpop.f32.mrf.mxu0
    %v1127 = vadd.f32 0.0, %v1126
    %v1128 = vpop.f32.mrf.mxu0
    %v1129 = vpop.f32.mrf.mxu0
    %v1130 = vpop.f32.mrf.mxu0
    %1131 = vdwg.mxu0
    %v1133 = vunpack.c.l.b16 %v1010
    %v1134 = vpack.c.b16 %v1133, %v1133
    %1135 = vrot.lane.b32.xlu0 %v1134, 112
    %v1136 = vpop.permute.xlu0 %1135
    %v1138 = vunpack.c.l.b16 %v1014
    %v1139 = vpack.c.b16 %v1138, %v1138
    %1140 = vrot.lane.b32.xlu0 %v1139, 112
    %v1141 = vpop.permute.xlu0 %1140
    %v1143 = vsel %vm69, %v1136, 0
    %v1146 = vsel %vm69, %v1141, 0
    %1148 = vmatprep.subr.bf16.mxu0 0
    %1149 = vmatpush1.bf16.xpose.msra.mxu0 0
    %1150 = vmatprep.subr.bf16.mxu0 0
    %1151 = vmatpush1.bf16.xpose.msra.mxu0 0
    %1152 = vmatprep.subr.bf16.mxu0 0
    %1153 = vmatpush1.bf16.xpose.msra.mxu0 0
    %1154 = vmatprep.subr.bf16.mxu0 0
    %1155 = vmatpush1.bf16.xpose.msra.mxu0 0
    %1156 = vmatprep.subr.bf16.mxu0 0
    %1157 = vmatpush1.bf16.xpose.msra.mxu0 0
    %1158 = vmatprep.subr.bf16.mxu0 0
    %1159 = vmatpush1.bf16.xpose.msra.mxu0 0
    %1160 = vmatprep.subr.bf16.mxu0 0
    %1161 = vmatpush1.bf16.xpose.msra.mxu0 0
    %1162 = vmatprep.subr.bf16.mxu0 0
    %1163 = vmatpush1.bf16.xpose.msra.mxu0 %v1146
    %1164 = vmatprep.subr.bf16.mxu0 0
    %1165 = vmatpush2.bf16.xpose.msra.mxu0 0
    %1166 = vmatprep.subr.bf16.mxu0 0
    %1167 = vmatpush2.bf16.xpose.msra.mxu0 0
    %1168 = vmatprep.subr.bf16.mxu0 0
    %1169 = vmatpush2.bf16.xpose.msra.mxu0 0
    %1170 = vmatprep.subr.bf16.mxu0 0
    %1171 = vmatpush2.bf16.xpose.msra.mxu0 0
    %1172 = vmatprep.subr.bf16.mxu0 0
    %1173 = vmatpush2.bf16.xpose.msra.mxu0 0
    %1174 = vmatprep.subr.bf16.mxu0 0
    %1175 = vmatpush2.bf16.xpose.msra.mxu0 0
    %1176 = vmatprep.subr.bf16.mxu0 0
    %1177 = vmatpush2.bf16.xpose.msra.mxu0 0
    %1178 = vmatprep.subr.bf16.mxu0 0
    %1179 = vmatpush2.bf16.xpose.msra.mxu0 0
    %1180 = vmatprep.mubr.bf16.mxu0 0
    %1181 = vmatmul.mubr.bf16.gmra.mxu0 %v1143
    %v1182 = vpop.f32.mrf.mxu0
    %v1183 = vadd.f32 0.0, %v1182
    %v1184 = vpop.f32.mrf.mxu0
    %v1185 = vpop.f32.mrf.mxu0
    %v1186 = vpop.f32.mrf.mxu0
    %1187 = vdwg.mxu0
    %v1189 = vunpack.c.l.b16 %v1011
    %v1190 = vpack.c.b16 %v1189, %v1189
    %1191 = vrot.lane.b32.xlu0 %v1190, 112
    %v1192 = vpop.permute.xlu0 %1191
    %v1194 = vunpack.c.l.b16 %v1015
    %v1195 = vpack.c.b16 %v1194, %v1194
    %1196 = vrot.lane.b32.xlu0 %v1195, 112
    %v1197 = vpop.permute.xlu0 %1196
    %v1199 = vsel %vm69, %v1192, 0
    %v1202 = vsel %vm69, %v1197, 0
    %1204 = vmatprep.subr.bf16.mxu0 0
    %1205 = vmatpush1.bf16.xpose.msra.mxu0 0
    %1206 = vmatprep.subr.bf16.mxu0 0
    %1207 = vmatpush1.bf16.xpose.msra.mxu0 0
    %1208 = vmatprep.subr.bf16.mxu0 0
    %1209 = vmatpush1.bf16.xpose.msra.mxu0 0
    %1210 = vmatprep.subr.bf16.mxu0 0
    %1211 = vmatpush1.bf16.xpose.msra.mxu0 0
    %1212 = vmatprep.subr.bf16.mxu0 0
    %1213 = vmatpush1.bf16.xpose.msra.mxu0 0
    %1214 = vmatprep.subr.bf16.mxu0 0
    %1215 = vmatpush1.bf16.xpose.msra.mxu0 0
    %1216 = vmatprep.subr.bf16.mxu0 0
    %1217 = vmatpush1.bf16.xpose.msra.mxu0 0
    %1218 = vmatprep.subr.bf16.mxu0 0
    %1219 = vmatpush1.bf16.xpose.msra.mxu0 %v1202
    %1220 = vmatprep.subr.bf16.mxu0 0
    %1221 = vmatpush2.bf16.xpose.msra.mxu0 0
    %1222 = vmatprep.subr.bf16.mxu0 0
    %1223 = vmatpush2.bf16.xpose.msra.mxu0 0
    %1224 = vmatprep.subr.bf16.mxu0 0
    %1225 = vmatpush2.bf16.xpose.msra.mxu0 0
    %1226 = vmatprep.subr.bf16.mxu0 0
    %1227 = vmatpush2.bf16.xpose.msra.mxu0 0
    %1228 = vmatprep.subr.bf16.mxu0 0
    %1229 = vmatpush2.bf16.xpose.msra.mxu0 0
    %1230 = vmatprep.subr.bf16.mxu0 0
    %1231 = vmatpush2.bf16.xpose.msra.mxu0 0
    %1232 = vmatprep.subr.bf16.mxu0 0
    %1233 = vmatpush2.bf16.xpose.msra.mxu0 0
    %1234 = vmatprep.subr.bf16.mxu0 0
    %1235 = vmatpush2.bf16.xpose.msra.mxu0 0
    %1236 = vmatprep.mubr.bf16.mxu0 0
    %1237 = vmatmul.mubr.bf16.gmra.mxu0 %v1199
    %v1238 = vpop.f32.mrf.mxu0
    %v1239 = vadd.f32 0.0, %v1238
    %v1240 = vpop.f32.mrf.mxu0
    %v1241 = vpop.f32.mrf.mxu0
    %v1242 = vpop.f32.mrf.mxu0
    %1243 = vdwg.mxu0
    %v1244 = vmul.f32 %v1071, 0.35355338
    %v1245 = vmul.f32 %v1127, 0.35355338
    %v1246 = vmul.f32 %v1183, 0.35355338
    %v1247 = vmul.f32 %v1239, 0.35355338
    %v1248 = vsel %vm69, %v1244, -inf
    %1249 = vmax.xlane.f32.xlu0 %v1248
    %v1250 = vpop.xlane.xlu0 %1249
    %v1251 = vsel %vm69, %v1245, -inf
    %1252 = vmax.xlane.f32.xlu0 %v1251
    %v1253 = vpop.xlane.xlu0 %1252
    %v1254 = vsel %vm69, %v1246, -inf
    %1255 = vmax.xlane.f32.xlu0 %v1254
    %v1256 = vpop.xlane.xlu0 %1255
    %v1257 = vsel %vm69, %v1247, -inf
    %1258 = vmax.xlane.f32.xlu0 %v1257
    %v1259 = vpop.xlane.xlu0 %1258
    %v1260 = vsub.f32 %v1244, %v1250
    %v1261 = vsub.f32 %v1245, %v1253
    %v1262 = vsub.f32 %v1246, %v1256
    %v1263 = vsub.f32 %v1247, %v1259
    %v1264 = vmul.f32 %v1260, 1.442695
    %v1265 = vpow.pop %v1264
    %v1266 = vmul.f32 %v1261, 1.442695
    %v1267 = vpow.pop %v1266
    %v1268 = vmul.f32 %v1262, 1.442695
    %v1269 = vpow.pop %v1268
    %v1270 = vmul.f32 %v1263, 1.442695
    %v1271 = vpow.pop %v1270
    %v1272 = vsel %vm69, %v1265, 0.0
    %1273 = vadd.xlane.f32.xlu0 %v1272
    %v1274 = vpop.xlane.xlu0 %1273
    %v1275 = vsel %vm69, %v1267, 0.0
    %1276 = vadd.xlane.f32.xlu0 %v1275
    %v1277 = vpop.xlane.xlu0 %1276
    %v1278 = vsel %vm69, %v1269, 0.0
    %1279 = vadd.xlane.f32.xlu0 %v1278
    %v1280 = vpop.xlane.xlu0 %1279
    %v1281 = vsel %vm69, %v1271, 0.0
    %1282 = vadd.xlane.f32.xlu0 %v1281
    %v1283 = vpop.xlane.xlu0 %1282
    %v1284 = vrcp.pop %v1274
    %v1285 = vrcp.pop %v1277
    %v1286 = vrcp.pop %v1280
    %v1287 = vrcp.pop %v1283
    %v1288 = vmul.f32 %v1265, %v1284
    %v1289 = vmul.f32 %v1267, %v1285
    %v1290 = vmul.f32 %v1269, %v1286
    %v1291 = vmul.f32 %v1271, %v1287
    %v1292 = vpack.c.bf16 %v1288, %v1288
    %v1293 = vpack.c.bf16 %v1289, %v1289
    %v1294 = vpack.c.bf16 %v1290, %v1290
    %v1295 = vpack.c.bf16 %v1291, %v1291
    %v1297 = vunpack.c.l.b16 %v1016
    %v1298 = vpack.c.b16 %v1297, %v1297
    %1299 = vrot.lane.b32.xlu0 %v1298, 112
    %v1300 = vpop.permute.xlu0 %1299
    %v1302 = vsel %vm69, %v1292, 0
    %v1305 = vsel %vm309, %v1300, 0
    %1307 = vmatprep.subr.bf16.mxu0 0
    %1308 = vmatpush1.bf16.msra.mxu0 0
    %1309 = vmatprep.subr.bf16.mxu0 0
    %1310 = vmatpush1.bf16.msra.mxu0 0
    %1311 = vmatprep.subr.bf16.mxu0 0
    %1312 = vmatpush1.bf16.msra.mxu0 0
    %1313 = vmatprep.subr.bf16.mxu0 0
    %1314 = vmatpush1.bf16.msra.mxu0 0
    %1315 = vmatprep.subr.bf16.mxu0 0
    %1316 = vmatpush1.bf16.msra.mxu0 0
    %1317 = vmatprep.subr.bf16.mxu0 0
    %1318 = vmatpush1.bf16.msra.mxu0 0
    %1319 = vmatprep.subr.bf16.mxu0 0
    %1320 = vmatpush1.bf16.msra.mxu0 0
    %1321 = vmatprep.subr.bf16.mxu0 0
    %1322 = vmatpush1.bf16.msra.mxu0 %v1305
    %1323 = vmatprep.subr.bf16.mxu0 0
    %1324 = vmatpush2.bf16.msra.mxu0 0
    %1325 = vmatprep.subr.bf16.mxu0 0
    %1326 = vmatpush2.bf16.msra.mxu0 0
    %1327 = vmatprep.subr.bf16.mxu0 0
    %1328 = vmatpush2.bf16.msra.mxu0 0
    %1329 = vmatprep.subr.bf16.mxu0 0
    %1330 = vmatpush2.bf16.msra.mxu0 0
    %1331 = vmatprep.subr.bf16.mxu0 0
    %1332 = vmatpush2.bf16.msra.mxu0 0
    %1333 = vmatprep.subr.bf16.mxu0 0
    %1334 = vmatpush2.bf16.msra.mxu0 0
    %1335 = vmatprep.subr.bf16.mxu0 0
    %1336 = vmatpush2.bf16.msra.mxu0 0
    %1337 = vmatprep.subr.bf16.mxu0 0
    %1338 = vmatpush2.bf16.msra.mxu0 0
    %1339 = vmatprep.mubr.bf16.mxu0 0
    %1340 = vmatmul.mubr.bf16.gmra.mxu0 %v1302
    %v1341 = vpop.f32.mrf.mxu0
    %v1342 = vadd.f32 0.0, %v1341
    %v1343 = vpop.f32.mrf.mxu0
    %v1344 = vpop.f32.mrf.mxu0
    %v1345 = vpop.f32.mrf.mxu0
    %1346 = vdwg.mxu0
    %v1348 = vunpack.c.l.b16 %v1017
    %v1349 = vpack.c.b16 %v1348, %v1348
    %1350 = vrot.lane.b32.xlu0 %v1349, 112
    %v1351 = vpop.permute.xlu0 %1350
    %v1353 = vsel %vm69, %v1293, 0
    %v1356 = vsel %vm309, %v1351, 0
    %1358 = vmatprep.subr.bf16.mxu0 0
    %1359 = vmatpush1.bf16.msra.mxu0 0
    %1360 = vmatprep.subr.bf16.mxu0 0
    %1361 = vmatpush1.bf16.msra.mxu0 0
    %1362 = vmatprep.subr.bf16.mxu0 0
    %1363 = vmatpush1.bf16.msra.mxu0 0
    %1364 = vmatprep.subr.bf16.mxu0 0
    %1365 = vmatpush1.bf16.msra.mxu0 0
    %1366 = vmatprep.subr.bf16.mxu0 0
    %1367 = vmatpush1.bf16.msra.mxu0 0
    %1368 = vmatprep.subr.bf16.mxu0 0
    %1369 = vmatpush1.bf16.msra.mxu0 0
    %1370 = vmatprep.subr.bf16.mxu0 0
    %1371 = vmatpush1.bf16.msra.mxu0 0
    %1372 = vmatprep.subr.bf16.mxu0 0
    %1373 = vmatpush1.bf16.msra.mxu0 %v1356
    %1374 = vmatprep.subr.bf16.mxu0 0
    %1375 = vmatpush2.bf16.msra.mxu0 0
    %1376 = vmatprep.subr.bf16.mxu0 0
    %1377 = vmatpush2.bf16.msra.mxu0 0
    %1378 = vmatprep.subr.bf16.mxu0 0
    %1379 = vmatpush2.bf16.msra.mxu0 0
    %1380 = vmatprep.subr.bf16.mxu0 0
    %1381 = vmatpush2.bf16.msra.mxu0 0
    %1382 = vmatprep.subr.bf16.mxu0 0
    %1383 = vmatpush2.bf16.msra.mxu0 0
    %1384 = vmatprep.subr.bf16.mxu0 0
    %1385 = vmatpush2.bf16.msra.mxu0 0
    %1386 = vmatprep.subr.bf16.mxu0 0
    %1387 = vmatpush2.bf16.msra.mxu0 0
    %1388 = vmatprep.subr.bf16.mxu0 0
    %1389 = vmatpush2.bf16.msra.mxu0 0
    %1390 = vmatprep.mubr.bf16.mxu0 0
    %1391 = vmatmul.mubr.bf16.gmra.mxu0 %v1353
    %v1392 = vpop.f32.mrf.mxu0
    %v1393 = vadd.f32 0.0, %v1392
    %v1394 = vpop.f32.mrf.mxu0
    %v1395 = vpop.f32.mrf.mxu0
    %v1396 = vpop.f32.mrf.mxu0
    %1397 = vdwg.mxu0
    %v1399 = vunpack.c.l.b16 %v1018
    %v1400 = vpack.c.b16 %v1399, %v1399
    %1401 = vrot.lane.b32.xlu0 %v1400, 112
    %v1402 = vpop.permute.xlu0 %1401
    %v1404 = vsel %vm69, %v1294, 0
    %v1407 = vsel %vm309, %v1402, 0
    %1409 = vmatprep.subr.bf16.mxu0 0
    %1410 = vmatpush1.bf16.msra.mxu0 0
    %1411 = vmatprep.subr.bf16.mxu0 0
    %1412 = vmatpush1.bf16.msra.mxu0 0
    %1413 = vmatprep.subr.bf16.mxu0 0
    %1414 = vmatpush1.bf16.msra.mxu0 0
    %1415 = vmatprep.subr.bf16.mxu0 0
    %1416 = vmatpush1.bf16.msra.mxu0 0
    %1417 = vmatprep.subr.bf16.mxu0 0
    %1418 = vmatpush1.bf16.msra.mxu0 0
    %1419 = vmatprep.subr.bf16.mxu0 0
    %1420 = vmatpush1.bf16.msra.mxu0 0
    %1421 = vmatprep.subr.bf16.mxu0 0
    %1422 = vmatpush1.bf16.msra.mxu0 0
    %1423 = vmatprep.subr.bf16.mxu0 0
    %1424 = vmatpush1.bf16.msra.mxu0 %v1407
    %1425 = vmatprep.subr.bf16.mxu0 0
    %1426 = vmatpush2.bf16.msra.mxu0 0
    %1427 = vmatprep.subr.bf16.mxu0 0
    %1428 = vmatpush2.bf16.msra.mxu0 0
    %1429 = vmatprep.subr.bf16.mxu0 0
    %1430 = vmatpush2.bf16.msra.mxu0 0
    %1431 = vmatprep.subr.bf16.mxu0 0
    %1432 = vmatpush2.bf16.msra.mxu0 0
    %1433 = vmatprep.subr.bf16.mxu0 0
    %1434 = vmatpush2.bf16.msra.mxu0 0
    %1435 = vmatprep.subr.bf16.mxu0 0
    %1436 = vmatpush2.bf16.msra.mxu0 0
    %1437 = vmatprep.subr.bf16.mxu0 0
    %1438 = vmatpush2.bf16.msra.mxu0 0
    %1439 = vmatprep.subr.bf16.mxu0 0
    %1440 = vmatpush2.bf16.msra.mxu0 0
    %1441 = vmatprep.mubr.bf16.mxu0 0
    %1442 = vmatmul.mubr.bf16.gmra.mxu0 %v1404
    %v1443 = vpop.f32.mrf.mxu0
    %v1444 = vadd.f32 0.0, %v1443
    %v1445 = vpop.f32.mrf.mxu0
    %v1446 = vpop.f32.mrf.mxu0
    %v1447 = vpop.f32.mrf.mxu0
    %1448 = vdwg.mxu0
    %v1450 = vunpack.c.l.b16 %v1019
    %v1451 = vpack.c.b16 %v1450, %v1450
    %1452 = vrot.lane.b32.xlu0 %v1451, 112
    %v1453 = vpop.permute.xlu0 %1452
    %v1455 = vsel %vm69, %v1295, 0
    %v1458 = vsel %vm309, %v1453, 0
    %1460 = vmatprep.subr.bf16.mxu0 0
    %1461 = vmatpush1.bf16.msra.mxu0 0
    %1462 = vmatprep.subr.bf16.mxu0 0
    %1463 = vmatpush1.bf16.msra.mxu0 0
    %1464 = vmatprep.subr.bf16.mxu0 0
    %1465 = vmatpush1.bf16.msra.mxu0 0
    %1466 = vmatprep.subr.bf16.mxu0 0
    %1467 = vmatpush1.bf16.msra.mxu0 0
    %1468 = vmatprep.subr.bf16.mxu0 0
    %1469 = vmatpush1.bf16.msra.mxu0 0
    %1470 = vmatprep.subr.bf16.mxu0 0
    %1471 = vmatpush1.bf16.msra.mxu0 0
    %1472 = vmatprep.subr.bf16.mxu0 0
    %1473 = vmatpush1.bf16.msra.mxu0 0
    %1474 = vmatprep.subr.bf16.mxu0 0
    %1475 = vmatpush1.bf16.msra.mxu0 %v1458
    %1476 = vmatprep.subr.bf16.mxu0 0
    %1477 = vmatpush2.bf16.msra.mxu0 0
    %1478 = vmatprep.subr.bf16.mxu0 0
    %1479 = vmatpush2.bf16.msra.mxu0 0
    %1480 = vmatprep.subr.bf16.mxu0 0
    %1481 = vmatpush2.bf16.msra.mxu0 0
    %1482 = vmatprep.subr.bf16.mxu0 0
    %1483 = vmatpush2.bf16.msra.mxu0 0
    %1484 = vmatprep.subr.bf16.mxu0 0
    %1485 = vmatpush2.bf16.msra.mxu0 0
    %1486 = vmatprep.subr.bf16.mxu0 0
    %1487 = vmatpush2.bf16.msra.mxu0 0
    %1488 = vmatprep.subr.bf16.mxu0 0
    %1489 = vmatpush2.bf16.msra.mxu0 0
    %1490 = vmatprep.subr.bf16.mxu0 0
    %1491 = vmatpush2.bf16.msra.mxu0 0
    %1492 = vmatprep.mubr.bf16.mxu0 0
    %1493 = vmatmul.mubr.bf16.gmra.mxu0 %v1455
    %v1494 = vpop.f32.mrf.mxu0
    %v1495 = vadd.f32 0.0, %v1494
    %v1496 = vpop.f32.mrf.mxu0
    %v1497 = vpop.f32.mrf.mxu0
    %v1498 = vpop.f32.mrf.mxu0
    %1499 = vdwg.mxu0
    %1504 = vrot.lane.b32.xlu0 %v1342, 16
    %v1505 = vpop.permute.xlu0 %1504
    %1506 = vrot.lane.b32.xlu0 %v1393, 16
    %v1507 = vpop.permute.xlu0 %1506
    %1508 = vrot.lane.b32.xlu0 %v1444, 16
    %v1509 = vpop.permute.xlu0 %1508
    %1510 = vrot.lane.b32.xlu0 %v1495, 16
    %v1511 = vpop.permute.xlu0 %1510
    %vm1516 = vcmask 195712
    %1517 = vst.msk [vmem:[#allocation8] sm:$0xff] %vm1516, %v1505
    %1518 = vst.msk [vmem:[#allocation8 + $0x8] sm:$0xff] %vm1516, %v1507
    %1519 = vst.msk [vmem:[#allocation8 + $0x10] sm:$0xff] %vm1516, %v1509
    %1520 = vst.msk [vmem:[#allocation8 + $0x18] sm:$0xff] %vm1516, %v1511
    %v1521 = vld [vmem:[#allocation2] sm:$0xf]
    %v1522 = vld [vmem:[#allocation2 + $0x4] sm:$0xf]
    %v1523 = vld [vmem:[#allocation2 + $0x8] sm:$0xf]
    %v1524 = vld [vmem:[#allocation2 + $0xc] sm:$0xf]
    %v1525 = vld [vmem:[#allocation5] sm:$0xf]
    %v1526 = vld [vmem:[#allocation5 + $0x4] sm:$0xf]
    %v1527 = vld [vmem:[#allocation5 + $0x8] sm:$0xf]
    %v1528 = vld [vmem:[#allocation5 + $0xc] sm:$0xf]
    %v1529 = vld [vmem:[#allocation7] sm:$0xf]
    %v1530 = vld [vmem:[#allocation7 + $0x4] sm:$0xf]
    %v1531 = vld [vmem:[#allocation7 + $0x8] sm:$0xf]
    %v1532 = vld [vmem:[#allocation7 + $0xc] sm:$0xf]
    %v1534 = vunpack.c.l.b16 %v1521
    %v1535 = vpack.c.b16 %v1534, %v1534
    %1536 = vrot.lane.b32.xlu0 %v1535, 104
    %v1537 = vpop.permute.xlu0 %1536
    %v1539 = vunpack.c.l.b16 %v1525
    %v1540 = vpack.c.b16 %v1539, %v1539
    %1541 = vrot.lane.b32.xlu0 %v1540, 104
    %v1542 = vpop.permute.xlu0 %1541
    %v1544 = vsel %vm69, %v1537, 0
    %v1547 = vsel %vm69, %v1542, 0
    %1549 = vmatprep.subr.bf16.mxu0 0
    %1550 = vmatpush1.bf16.xpose.msra.mxu0 0
    %1551 = vmatprep.subr.bf16.mxu0 0
    %1552 = vmatpush1.bf16.xpose.msra.mxu0 0
    %1553 = vmatprep.subr.bf16.mxu0 0
    %1554 = vmatpush1.bf16.xpose.msra.mxu0 0
    %1555 = vmatprep.subr.bf16.mxu0 0
    %1556 = vmatpush1.bf16.xpose.msra.mxu0 0
    %1557 = vmatprep.subr.bf16.mxu0 0
    %1558 = vmatpush1.bf16.xpose.msra.mxu0 0
    %1559 = vmatprep.subr.bf16.mxu0 0
    %1560 = vmatpush1.bf16.xpose.msra.mxu0 0
    %1561 = vmatprep.subr.bf16.mxu0 0
    %1562 = vmatpush1.bf16.xpose.msra.mxu0 0
    %1563 = vmatprep.subr.bf16.mxu0 0
    %1564 = vmatpush1.bf16.xpose.msra.mxu0 %v1547
    %1565 = vmatprep.subr.bf16.mxu0 0
    %1566 = vmatpush2.bf16.xpose.msra.mxu0 0
    %1567 = vmatprep.subr.bf16.mxu0 0
    %1568 = vmatpush2.bf16.xpose.msra.mxu0 0
    %1569 = vmatprep.subr.bf16.mxu0 0
    %1570 = vmatpush2.bf16.xpose.msra.mxu0 0
    %1571 = vmatprep.subr.bf16.mxu0 0
    %1572 = vmatpush2.bf16.xpose.msra.mxu0 0
    %1573 = vmatprep.subr.bf16.mxu0 0
    %1574 = vmatpush2.bf16.xpose.msra.mxu0 0
    %1575 = vmatprep.subr.bf16.mxu0 0
    %1576 = vmatpush2.bf16.xpose.msra.mxu0 0
    %1577 = vmatprep.subr.bf16.mxu0 0
    %1578 = vmatpush2.bf16.xpose.msra.mxu0 0
    %1579 = vmatprep.subr.bf16.mxu0 0
    %1580 = vmatpush2.bf16.xpose.msra.mxu0 0
    %1581 = vmatprep.mubr.bf16.mxu0 0
    %1582 = vmatmul.mubr.bf16.gmra.mxu0 %v1544
    %v1583 = vpop.f32.mrf.mxu0
    %v1584 = vadd.f32 0.0, %v1583
    %v1585 = vpop.f32.mrf.mxu0
    %v1586 = vpop.f32.mrf.mxu0
    %v1587 = vpop.f32.mrf.mxu0
    %1588 = vdwg.mxu0
    %v1590 = vunpack.c.l.b16 %v1522
    %v1591 = vpack.c.b16 %v1590, %v1590
    %1592 = vrot.lane.b32.xlu0 %v1591, 104
    %v1593 = vpop.permute.xlu0 %1592
    %v1595 = vunpack.c.l.b16 %v1526
    %v1596 = vpack.c.b16 %v1595, %v1595
    %1597 = vrot.lane.b32.xlu0 %v1596, 104
    %v1598 = vpop.permute.xlu0 %1597
    %v1600 = vsel %vm69, %v1593, 0
    %v1603 = vsel %vm69, %v1598, 0
    %1605 = vmatprep.subr.bf16.mxu0 0
    %1606 = vmatpush1.bf16.xpose.msra.mxu0 0
    %1607 = vmatprep.subr.bf16.mxu0 0
    %1608 = vmatpush1.bf16.xpose.msra.mxu0 0
    %1609 = vmatprep.subr.bf16.mxu0 0
    %1610 = vmatpush1.bf16.xpose.msra.mxu0 0
    %1611 = vmatprep.subr.bf16.mxu0 0
    %1612 = vmatpush1.bf16.xpose.msra.mxu0 0
    %1613 = vmatprep.subr.bf16.mxu0 0
    %1614 = vmatpush1.bf16.xpose.msra.mxu0 0
    %1615 = vmatprep.subr.bf16.mxu0 0
    %1616 = vmatpush1.bf16.xpose.msra.mxu0 0
    %1617 = vmatprep.subr.bf16.mxu0 0
    %1618 = vmatpush1.bf16.xpose.msra.mxu0 0
    %1619 = vmatprep.subr.bf16.mxu0 0
    %1620 = vmatpush1.bf16.xpose.msra.mxu0 %v1603
    %1621 = vmatprep.subr.bf16.mxu0 0
    %1622 = vmatpush2.bf16.xpose.msra.mxu0 0
    %1623 = vmatprep.subr.bf16.mxu0 0
    %1624 = vmatpush2.bf16.xpose.msra.mxu0 0
    %1625 = vmatprep.subr.bf16.mxu0 0
    %1626 = vmatpush2.bf16.xpose.msra.mxu0 0
    %1627 = vmatprep.subr.bf16.mxu0 0
    %1628 = vmatpush2.bf16.xpose.msra.mxu0 0
    %1629 = vmatprep.subr.bf16.mxu0 0
    %1630 = vmatpush2.bf16.xpose.msra.mxu0 0
    %1631 = vmatprep.subr.bf16.mxu0 0
    %1632 = vmatpush2.bf16.xpose.msra.mxu0 0
    %1633 = vmatprep.subr.bf16.mxu0 0
    %1634 = vmatpush2.bf16.xpose.msra.mxu0 0
    %1635 = vmatprep.subr.bf16.mxu0 0
    %1636 = vmatpush2.bf16.xpose.msra.mxu0 0
    %1637 = vmatprep.mubr.bf16.mxu0 0
    %1638 = vmatmul.mubr.bf16.gmra.mxu0 %v1600
    %v1639 = vpop.f32.mrf.mxu0
    %v1640 = vadd.f32 0.0, %v1639
    %v1641 = vpop.f32.mrf.mxu0
    %v1642 = vpop.f32.mrf.mxu0
    %v1643 = vpop.f32.mrf.mxu0
    %1644 = vdwg.mxu0
    %v1646 = vunpack.c.l.b16 %v1523
    %v1647 = vpack.c.b16 %v1646, %v1646
    %1648 = vrot.lane.b32.xlu0 %v1647, 104
    %v1649 = vpop.permute.xlu0 %1648
    %v1651 = vunpack.c.l.b16 %v1527
    %v1652 = vpack.c.b16 %v1651, %v1651
    %1653 = vrot.lane.b32.xlu0 %v1652, 104
    %v1654 = vpop.permute.xlu0 %1653
    %v1656 = vsel %vm69, %v1649, 0
    %v1659 = vsel %vm69, %v1654, 0
    %1661 = vmatprep.subr.bf16.mxu0 0
    %1662 = vmatpush1.bf16.xpose.msra.mxu0 0
    %1663 = vmatprep.subr.bf16.mxu0 0
    %1664 = vmatpush1.bf16.xpose.msra.mxu0 0
    %1665 = vmatprep.subr.bf16.mxu0 0
    %1666 = vmatpush1.bf16.xpose.msra.mxu0 0
    %1667 = vmatprep.subr.bf16.mxu0 0
    %1668 = vmatpush1.bf16.xpose.msra.mxu0 0
    %1669 = vmatprep.subr.bf16.mxu0 0
    %1670 = vmatpush1.bf16.xpose.msra.mxu0 0
    %1671 = vmatprep.subr.bf16.mxu0 0
    %1672 = vmatpush1.bf16.xpose.msra.mxu0 0
    %1673 = vmatprep.subr.bf16.mxu0 0
    %1674 = vmatpush1.bf16.xpose.msra.mxu0 0
    %1675 = vmatprep.subr.bf16.mxu0 0
    %1676 = vmatpush1.bf16.xpose.msra.mxu0 %v1659
    %1677 = vmatprep.subr.bf16.mxu0 0
    %1678 = vmatpush2.bf16.xpose.msra.mxu0 0
    %1679 = vmatprep.subr.bf16.mxu0 0
    %1680 = vmatpush2.bf16.xpose.msra.mxu0 0
    %1681 = vmatprep.subr.bf16.mxu0 0
    %1682 = vmatpush2.bf16.xpose.msra.mxu0 0
    %1683 = vmatprep.subr.bf16.mxu0 0
    %1684 = vmatpush2.bf16.xpose.msra.mxu0 0
    %1685 = vmatprep.subr.bf16.mxu0 0
    %1686 = vmatpush2.bf16.xpose.msra.mxu0 0
    %1687 = vmatprep.subr.bf16.mxu0 0
    %1688 = vmatpush2.bf16.xpose.msra.mxu0 0
    %1689 = vmatprep.subr.bf16.mxu0 0
    %1690 = vmatpush2.bf16.xpose.msra.mxu0 0
    %1691 = vmatprep.subr.bf16.mxu0 0
    %1692 = vmatpush2.bf16.xpose.msra.mxu0 0
    %1693 = vmatprep.mubr.bf16.mxu0 0
    %1694 = vmatmul.mubr.bf16.gmra.mxu0 %v1656
    %v1695 = vpop.f32.mrf.mxu0
    %v1696 = vadd.f32 0.0, %v1695
    %v1697 = vpop.f32.mrf.mxu0
    %v1698 = vpop.f32.mrf.mxu0
    %v1699 = vpop.f32.mrf.mxu0
    %1700 = vdwg.mxu0
    %v1702 = vunpack.c.l.b16 %v1524
    %v1703 = vpack.c.b16 %v1702, %v1702
    %1704 = vrot.lane.b32.xlu0 %v1703, 104
    %v1705 = vpop.permute.xlu0 %1704
    %v1707 = vunpack.c.l.b16 %v1528
    %v1708 = vpack.c.b16 %v1707, %v1707
    %1709 = vrot.lane.b32.xlu0 %v1708, 104
    %v1710 = vpop.permute.xlu0 %1709
    %v1712 = vsel %vm69, %v1705, 0
    %v1715 = vsel %vm69, %v1710, 0
    %1717 = vmatprep.subr.bf16.mxu0 0
    %1718 = vmatpush1.bf16.xpose.msra.mxu0 0
    %1719 = vmatprep.subr.bf16.mxu0 0
    %1720 = vmatpush1.bf16.xpose.msra.mxu0 0
    %1721 = vmatprep.subr.bf16.mxu0 0
    %1722 = vmatpush1.bf16.xpose.msra.mxu0 0
    %1723 = vmatprep.subr.bf16.mxu0 0
    %1724 = vmatpush1.bf16.xpose.msra.mxu0 0
    %1725 = vmatprep.subr.bf16.mxu0 0
    %1726 = vmatpush1.bf16.xpose.msra.mxu0 0
    %1727 = vmatprep.subr.bf16.mxu0 0
    %1728 = vmatpush1.bf16.xpose.msra.mxu0 0
    %1729 = vmatprep.subr.bf16.mxu0 0
    %1730 = vmatpush1.bf16.xpose.msra.mxu0 0
    %1731 = vmatprep.subr.bf16.mxu0 0
    %1732 = vmatpush1.bf16.xpose.msra.mxu0 %v1715
    %1733 = vmatprep.subr.bf16.mxu0 0
    %1734 = vmatpush2.bf16.xpose.msra.mxu0 0
    %1735 = vmatprep.subr.bf16.mxu0 0
    %1736 = vmatpush2.bf16.xpose.msra.mxu0 0
    %1737 = vmatprep.subr.bf16.mxu0 0
    %1738 = vmatpush2.bf16.xpose.msra.mxu0 0
    %1739 = vmatprep.subr.bf16.mxu0 0
    %1740 = vmatpush2.bf16.xpose.msra.mxu0 0
    %1741 = vmatprep.subr.bf16.mxu0 0
    %1742 = vmatpush2.bf16.xpose.msra.mxu0 0
    %1743 = vmatprep.subr.bf16.mxu0 0
    %1744 = vmatpush2.bf16.xpose.msra.mxu0 0
    %1745 = vmatprep.subr.bf16.mxu0 0
    %1746 = vmatpush2.bf16.xpose.msra.mxu0 0
    %1747 = vmatprep.subr.bf16.mxu0 0
    %1748 = vmatpush2.bf16.xpose.msra.mxu0 0
    %1749 = vmatprep.mubr.bf16.mxu0 0
    %1750 = vmatmul.mubr.bf16.gmra.mxu0 %v1712
    %v1751 = vpop.f32.mrf.mxu0
    %v1752 = vadd.f32 0.0, %v1751
    %v1753 = vpop.f32.mrf.mxu0
    %v1754 = vpop.f32.mrf.mxu0
    %v1755 = vpop.f32.mrf.mxu0
    %1756 = vdwg.mxu0
    %v1757 = vmul.f32 %v1584, 0.35355338
    %v1758 = vmul.f32 %v1640, 0.35355338
    %v1759 = vmul.f32 %v1696, 0.35355338
    %v1760 = vmul.f32 %v1752, 0.35355338
    %v1761 = vsel %vm69, %v1757, -inf
    %1762 = vmax.xlane.f32.xlu0 %v1761
    %v1763 = vpop.xlane.xlu0 %1762
    %v1764 = vsel %vm69, %v1758, -inf
    %1765 = vmax.xlane.f32.xlu0 %v1764
    %v1766 = vpop.xlane.xlu0 %1765
    %v1767 = vsel %vm69, %v1759, -inf
    %1768 = vmax.xlane.f32.xlu0 %v1767
    %v1769 = vpop.xlane.xlu0 %1768
    %v1770 = vsel %vm69, %v1760, -inf
    %1771 = vmax.xlane.f32.xlu0 %v1770
    %v1772 = vpop.xlane.xlu0 %1771
    %v1773 = vsub.f32 %v1757, %v1763
    %v1774 = vsub.f32 %v1758, %v1766
    %v1775 = vsub.f32 %v1759, %v1769
    %v1776 = vsub.f32 %v1760, %v1772
    %v1777 = vmul.f32 %v1773, 1.442695
    %v1778 = vpow.pop %v1777
    %v1779 = vmul.f32 %v1774, 1.442695
    %v1780 = vpow.pop %v1779
    %v1781 = vmul.f32 %v1775, 1.442695
    %v1782 = vpow.pop %v1781
    %v1783 = vmul.f32 %v1776, 1.442695
    %v1784 = vpow.pop %v1783
    %v1785 = vsel %vm69, %v1778, 0.0
    %1786 = vadd.xlane.f32.xlu0 %v1785
    %v1787 = vpop.xlane.xlu0 %1786
    %v1788 = vsel %vm69, %v1780, 0.0
    %1789 = vadd.xlane.f32.xlu0 %v1788
    %v1790 = vpop.xlane.xlu0 %1789
    %v1791 = vsel %vm69, %v1782, 0.0
    %1792 = vadd.xlane.f32.xlu0 %v1791
    %v1793 = vpop.xlane.xlu0 %1792
    %v1794 = vsel %vm69, %v1784, 0.0
    %1795 = vadd.xlane.f32.xlu0 %v1794
    %v1796 = vpop.xlane.xlu0 %1795
    %v1797 = vrcp.pop %v1787
    %v1798 = vrcp.pop %v1790
    %v1799 = vrcp.pop %v1793
    %v1800 = vrcp.pop %v1796
    %v1801 = vmul.f32 %v1778, %v1797
    %v1802 = vmul.f32 %v1780, %v1798
    %v1803 = vmul.f32 %v1782, %v1799
    %v1804 = vmul.f32 %v1784, %v1800
    %v1805 = vpack.c.bf16 %v1801, %v1801
    %v1806 = vpack.c.bf16 %v1802, %v1802
    %v1807 = vpack.c.bf16 %v1803, %v1803
    %v1808 = vpack.c.bf16 %v1804, %v1804
    %v1810 = vunpack.c.l.b16 %v1529
    %v1811 = vpack.c.b16 %v1810, %v1810
    %1812 = vrot.lane.b32.xlu0 %v1811, 104
    %v1813 = vpop.permute.xlu0 %1812
    %v1815 = vsel %vm69, %v1805, 0
    %v1818 = vsel %vm309, %v1813, 0
    %1820 = vmatprep.subr.bf16.mxu0 0
    %1821 = vmatpush1.bf16.msra.mxu0 0
    %1822 = vmatprep.subr.bf16.mxu0 0
    %1823 = vmatpush1.bf16.msra.mxu0 0
    %1824 = vmatprep.subr.bf16.mxu0 0
    %1825 = vmatpush1.bf16.msra.mxu0 0
    %1826 = vmatprep.subr.bf16.mxu0 0
    %1827 = vmatpush1.bf16.msra.mxu0 0
    %1828 = vmatprep.subr.bf16.mxu0 0
    %1829 = vmatpush1.bf16.msra.mxu0 0
    %1830 = vmatprep.subr.bf16.mxu0 0
    %1831 = vmatpush1.bf16.msra.mxu0 0
    %1832 = vmatprep.subr.bf16.mxu0 0
    %1833 = vmatpush1.bf16.msra.mxu0 0
    %1834 = vmatprep.subr.bf16.mxu0 0
    %1835 = vmatpush1.bf16.msra.mxu0 %v1818
    %1836 = vmatprep.subr.bf16.mxu0 0
    %1837 = vmatpush2.bf16.msra.mxu0 0
    %1838 = vmatprep.subr.bf16.mxu0 0
    %1839 = vmatpush2.bf16.msra.mxu0 0
    %1840 = vmatprep.subr.bf16.mxu0 0
    %1841 = vmatpush2.bf16.msra.mxu0 0
    %1842 = vmatprep.subr.bf16.mxu0 0
    %1843 = vmatpush2.bf16.msra.mxu0 0
    %1844 = vmatprep.subr.bf16.mxu0 0
    %1845 = vmatpush2.bf16.msra.mxu0 0
    %1846 = vmatprep.subr.bf16.mxu0 0
    %1847 = vmatpush2.bf16.msra.mxu0 0
    %1848 = vmatprep.subr.bf16.mxu0 0
    %1849 = vmatpush2.bf16.msra.mxu0 0
    %1850 = vmatprep.subr.bf16.mxu0 0
    %1851 = vmatpush2.bf16.msra.mxu0 0
    %1852 = vmatprep.mubr.bf16.mxu0 0
    %1853 = vmatmul.mubr.bf16.gmra.mxu0 %v1815
    %v1854 = vpop.f32.mrf.mxu0
    %v1855 = vadd.f32 0.0, %v1854
    %v1856 = vpop.f32.mrf.mxu0
    %v1857 = vpop.f32.mrf.mxu0
    %v1858 = vpop.f32.mrf.mxu0
    %1859 = vdwg.mxu0
    %v1861 = vunpack.c.l.b16 %v1530
    %v1862 = vpack.c.b16 %v1861, %v1861
    %1863 = vrot.lane.b32.xlu0 %v1862, 104
    %v1864 = vpop.permute.xlu0 %1863
    %v1866 = vsel %vm69, %v1806, 0
    %v1869 = vsel %vm309, %v1864, 0
    %1871 = vmatprep.subr.bf16.mxu0 0
    %1872 = vmatpush1.bf16.msra.mxu0 0
    %1873 = vmatprep.subr.bf16.mxu0 0
    %1874 = vmatpush1.bf16.msra.mxu0 0
    %1875 = vmatprep.subr.bf16.mxu0 0
    %1876 = vmatpush1.bf16.msra.mxu0 0
    %1877 = vmatprep.subr.bf16.mxu0 0
    %1878 = vmatpush1.bf16.msra.mxu0 0
    %1879 = vmatprep.subr.bf16.mxu0 0
    %1880 = vmatpush1.bf16.msra.mxu0 0
    %1881 = vmatprep.subr.bf16.mxu0 0
    %1882 = vmatpush1.bf16.msra.mxu0 0
    %1883 = vmatprep.subr.bf16.mxu0 0
    %1884 = vmatpush1.bf16.msra.mxu0 0
    %1885 = vmatprep.subr.bf16.mxu0 0
    %1886 = vmatpush1.bf16.msra.mxu0 %v1869
    %1887 = vmatprep.subr.bf16.mxu0 0
    %1888 = vmatpush2.bf16.msra.mxu0 0
    %1889 = vmatprep.subr.bf16.mxu0 0
    %1890 = vmatpush2.bf16.msra.mxu0 0
    %1891 = vmatprep.subr.bf16.mxu0 0
    %1892 = vmatpush2.bf16.msra.mxu0 0
    %1893 = vmatprep.subr.bf16.mxu0 0
    %1894 = vmatpush2.bf16.msra.mxu0 0
    %1895 = vmatprep.subr.bf16.mxu0 0
    %1896 = vmatpush2.bf16.msra.mxu0 0
    %1897 = vmatprep.subr.bf16.mxu0 0
    %1898 = vmatpush2.bf16.msra.mxu0 0
    %1899 = vmatprep.subr.bf16.mxu0 0
    %1900 = vmatpush2.bf16.msra.mxu0 0
    %1901 = vmatprep.subr.bf16.mxu0 0
    %1902 = vmatpush2.bf16.msra.mxu0 0
    %1903 = vmatprep.mubr.bf16.mxu0 0
    %1904 = vmatmul.mubr.bf16.gmra.mxu0 %v1866
    %v1905 = vpop.f32.mrf.mxu0
    %v1906 = vadd.f32 0.0, %v1905
    %v1907 = vpop.f32.mrf.mxu0
    %v1908 = vpop.f32.mrf.mxu0
    %v1909 = vpop.f32.mrf.mxu0
    %1910 = vdwg.mxu0
    %v1912 = vunpack.c.l.b16 %v1531
    %v1913 = vpack.c.b16 %v1912, %v1912
    %1914 = vrot.lane.b32.xlu0 %v1913, 104
    %v1915 = vpop.permute.xlu0 %1914
    %v1917 = vsel %vm69, %v1807, 0
    %v1920 = vsel %vm309, %v1915, 0
    %1922 = vmatprep.subr.bf16.mxu0 0
    %1923 = vmatpush1.bf16.msra.mxu0 0
    %1924 = vmatprep.subr.bf16.mxu0 0
    %1925 = vmatpush1.bf16.msra.mxu0 0
    %1926 = vmatprep.subr.bf16.mxu0 0
    %1927 = vmatpush1.bf16.msra.mxu0 0
    %1928 = vmatprep.subr.bf16.mxu0 0
    %1929 = vmatpush1.bf16.msra.mxu0 0
    %1930 = vmatprep.subr.bf16.mxu0 0
    %1931 = vmatpush1.bf16.msra.mxu0 0
    %1932 = vmatprep.subr.bf16.mxu0 0
    %1933 = vmatpush1.bf16.msra.mxu0 0
    %1934 = vmatprep.subr.bf16.mxu0 0
    %1935 = vmatpush1.bf16.msra.mxu0 0
    %1936 = vmatprep.subr.bf16.mxu0 0
    %1937 = vmatpush1.bf16.msra.mxu0 %v1920
    %1938 = vmatprep.subr.bf16.mxu0 0
    %1939 = vmatpush2.bf16.msra.mxu0 0
    %1940 = vmatprep.subr.bf16.mxu0 0
    %1941 = vmatpush2.bf16.msra.mxu0 0
    %1942 = vmatprep.subr.bf16.mxu0 0
    %1943 = vmatpush2.bf16.msra.mxu0 0
    %1944 = vmatprep.subr.bf16.mxu0 0
    %1945 = vmatpush2.bf16.msra.mxu0 0
    %1946 = vmatprep.subr.bf16.mxu0 0
    %1947 = vmatpush2.bf16.msra.mxu0 0
    %1948 = vmatprep.subr.bf16.mxu0 0
    %1949 = vmatpush2.bf16.msra.mxu0 0
    %1950 = vmatprep.subr.bf16.mxu0 0
    %1951 = vmatpush2.bf16.msra.mxu0 0
    %1952 = vmatprep.subr.bf16.mxu0 0
    %1953 = vmatpush2.bf16.msra.mxu0 0
    %1954 = vmatprep.mubr.bf16.mxu0 0
    %1955 = vmatmul.mubr.bf16.gmra.mxu0 %v1917
    %v1956 = vpop.f32.mrf.mxu0
    %v1957 = vadd.f32 0.0, %v1956
    %v1958 = vpop.f32.mrf.mxu0
    %v1959 = vpop.f32.mrf.mxu0
    %v1960 = vpop.f32.mrf.mxu0
    %1961 = vdwg.mxu0
    %v1963 = vunpack.c.l.b16 %v1532
    %v1964 = vpack.c.b16 %v1963, %v1963
    %1965 = vrot.lane.b32.xlu0 %v1964, 104
    %v1966 = vpop.permute.xlu0 %1965
    %v1968 = vsel %vm69, %v1808, 0
    %v1971 = vsel %vm309, %v1966, 0
    %1973 = vmatprep.subr.bf16.mxu0 0
    %1974 = vmatpush1.bf16.msra.mxu0 0
    %1975 = vmatprep.subr.bf16.mxu0 0
    %1976 = vmatpush1.bf16.msra.mxu0 0
    %1977 = vmatprep.subr.bf16.mxu0 0
    %1978 = vmatpush1.bf16.msra.mxu0 0
    %1979 = vmatprep.subr.bf16.mxu0 0
    %1980 = vmatpush1.bf16.msra.mxu0 0
    %1981 = vmatprep.subr.bf16.mxu0 0
    %1982 = vmatpush1.bf16.msra.mxu0 0
    %1983 = vmatprep.subr.bf16.mxu0 0
    %1984 = vmatpush1.bf16.msra.mxu0 0
    %1985 = vmatprep.subr.bf16.mxu0 0
    %1986 = vmatpush1.bf16.msra.mxu0 0
    %1987 = vmatprep.subr.bf16.mxu0 0
    %1988 = vmatpush1.bf16.msra.mxu0 %v1971
    %1989 = vmatprep.subr.bf16.mxu0 0
    %1990 = vmatpush2.bf16.msra.mxu0 0
    %1991 = vmatprep.subr.bf16.mxu0 0
    %1992 = vmatpush2.bf16.msra.mxu0 0
    %1993 = vmatprep.subr.bf16.mxu0 0
    %1994 = vmatpush2.bf16.msra.mxu0 0
    %1995 = vmatprep.subr.bf16.mxu0 0
    %1996 = vmatpush2.bf16.msra.mxu0 0
    %1997 = vmatprep.subr.bf16.mxu0 0
    %1998 = vmatpush2.bf16.msra.mxu0 0
    %1999 = vmatprep.subr.bf16.mxu0 0
    %2000 = vmatpush2.bf16.msra.mxu0 0
    %2001 = vmatprep.subr.bf16.mxu0 0
    %2002 = vmatpush2.bf16.msra.mxu0 0
    %2003 = vmatprep.subr.bf16.mxu0 0
    %2004 = vmatpush2.bf16.msra.mxu0 0
    %2005 = vmatprep.mubr.bf16.mxu0 0
    %2006 = vmatmul.mubr.bf16.gmra.mxu0 %v1968
    %v2007 = vpop.f32.mrf.mxu0
    %v2008 = vadd.f32 0.0, %v2007
    %v2009 = vpop.f32.mrf.mxu0
    %v2010 = vpop.f32.mrf.mxu0
    %v2011 = vpop.f32.mrf.mxu0
    %2012 = vdwg.mxu0
    %2017 = vrot.lane.b32.xlu0 %v1855, 24
    %v2018 = vpop.permute.xlu0 %2017
    %2019 = vrot.lane.b32.xlu0 %v1906, 24
    %v2020 = vpop.permute.xlu0 %2019
    %2021 = vrot.lane.b32.xlu0 %v1957, 24
    %v2022 = vpop.permute.xlu0 %2021
    %2023 = vrot.lane.b32.xlu0 %v2008, 24
    %v2024 = vpop.permute.xlu0 %2023
    %vm2029 = vcmask 261312
    %2030 = vst.msk [vmem:[#allocation8] sm:$0xff] %vm2029, %v2018
    %2031 = vst.msk [vmem:[#allocation8 + $0x8] sm:$0xff] %vm2029, %v2020
    %2032 = vst.msk [vmem:[#allocation8 + $0x10] sm:$0xff] %vm2029, %v2022
    %2033 = vst.msk [vmem:[#allocation8 + $0x18] sm:$0xff] %vm2029, %v2024
    // Predicated region
    $region26: #{tpu_custom_call.1} parent=1 // pred_check
      _
    $region27: #{tpu_custom_call.1} parent=1 // pred_check_branch
      %2035 = sbr.rel (0) target = $region29
    $region28: #{tpu_custom_call.1} parent=1 // pred_region
      %s2037 = ssub.s32 512, 512
      %2038 = vsyncadd [#allocation4], %s2037
      %s2039 = sshll.u32 [#allocation8], 4
      %s2040 = int_to_ptr.vmem [resolvable:$true] %s2039
      %2045 = dma.vmem_to_hbm [thread:$0]  %s2040, 512, %s3, [#allocation4], 128, 128, 8
    $region29: #{tpu_custom_call.1} parent=1 // pred_fallthru
      _
    // Predicated region
    $region30: #{tpu_custom_call.1} parent=1 // pred_check
      _
    $region31: #{tpu_custom_call.1} parent=1 // pred_check_branch
      %2047 = sbr.rel (0) target = $region33
    $region32: #{tpu_custom_call.1} parent=1 // pred_region
      %2048 = dma.done [#allocation4], 512
    $region33: #{tpu_custom_call.1} parent=1 // pred_fallthru
      _
    %2049 = vsyncpa [#allocation3], 1
    %2050 = vsyncpa [#allocation6], 1
    %2051 = vsyncpa [#allocation4], 1

</llo_original>
